<compile_context>
chip_gen: v6e
topology: v6e:2x2x1
jax: 0.10.0
libtpu: 0.0.40
codegen_flags: <defaults>
</compile_context>

<pallas_src>
import math
import functools

import jax
import jax.numpy as jnp
from jax import lax
from jax.experimental import pallas as pl
from jax.experimental.pallas import tpu as pltpu


def _vmem_limit_bytes():
    """Per-generation scoped-VMEM budget (~75% of physical, capped)."""
    try:
        cap = pltpu.get_tpu_info().vmem_capacity_bytes
    except Exception:  # pragma: no cover - defensive fallback
        cap = 64 * 1024 * 1024
    return int(min(cap * 3 // 4, 100 * 1024 * 1024))


# --------------------------------------------------------------------------
# Kernel 1: the transformer layer stack (grid = (batch, layer)).
#
# IMPORTANT: the residual stream is carried in hid_ref across the layer axis.
# This is only correct because the layer axis is the innermost, sequential
# ("arbitrary") grid axis and hid_ref's block index is constant along it.
# Do not reorder the grid.
# --------------------------------------------------------------------------
def _layer_kernel(
    # inputs
    embs_ref,                                  # (S, H) bf16 (pipelined, per-batch)
    wqkv_ref, bqkv_ref,                        # (H, 3H) bf16, (1, 3H) f32
    wo_ref, bo_ref,                            # (H, H) bf16, (1, H) f32
    ln1g_ref, ln1b_ref,                        # (1, H) f32
    w1_ref, b1_ref,                            # (H, F) bf16, (1, F) f32
    w2_ref, b2_ref,                            # (F, H) bf16, (1, H) f32
    ln2g_ref, ln2b_ref,                        # (1, H) f32
    # outputs
    hid_ref,                                   # (S, H) bf16: resident residual stream
    # scratch
    ctx_scratch,                               # VMEM (S, H) bf16: stacked attention heads
    *, num_heads, causal, seq_chunk):
    layer = pl.program_id(1)

    # Initialize the resident residual stream from the embeddings exactly once
    # per batch element (the output block is resident across the layer loop).
    @pl.when(layer == 0)
    def _init():
        hid_ref[...] = embs_ref[...]

    x = hid_ref[...].astype(jnp.float32)        # (S, H) f32
    S, H = x.shape
    hd = H // num_heads
    scale = 1.0 / math.sqrt(hd)

    def layernorm(v, g_ref, bias_ref):
        mu = jnp.mean(v, axis=-1, keepdims=True)
        var = jnp.mean((v - mu) ** 2, axis=-1, keepdims=True)
        return (v - mu) * lax.rsqrt(var + 1e-5) * g_ref[...] + bias_ref[...]

    xb = x.astype(jnp.bfloat16)

    # ---- Fused QKV projection: one lane-dense (H, 3H) matmul + (1, 3H) bias.
    qkv = jnp.dot(xb, wqkv_ref[...], preferred_element_type=jnp.float32) + bqkv_ref[...]

    if causal:
        qi = lax.broadcasted_iota(jnp.int32, (S, S), 0)
        ki = lax.broadcasted_iota(jnp.int32, (S, S), 1)
        causal_mask = ki <= qi                  # hoisted out of the head loop

    # ---- Self attention (multi-head, causal).
    # Each head's context is written into a lane-dense VMEM scratch at column
    # offset h*hd, so the output projection is ONE full-K (S,H)@(H,H) matmul.
    # TODO(synk): convert to lax.fori_loop / flash-tiling for large num_heads / S.
    for h in range(num_heads):                  # static unroll (small nh)
        qh = qkv[:, h * hd:(h + 1) * hd]
        kh = qkv[:, H + h * hd:H + (h + 1) * hd]
        vh = qkv[:, 2 * H + h * hd:2 * H + (h + 1) * hd]

        s = lax.dot_general(qh.astype(jnp.bfloat16), kh.astype(jnp.bfloat16),
                            (((1,), (1,)), ((), ())),
                            preferred_element_type=jnp.float32) * scale    # (S, S)
        if causal:
            s = jnp.where(causal_mask, s, -1e30)
        s = s - jnp.max(s, axis=-1, keepdims=True)
        e = jnp.exp(s)
        p = e / jnp.sum(e, axis=-1, keepdims=True)                         # exact softmax

        ctx = jnp.dot(p.astype(jnp.bfloat16), vh.astype(jnp.bfloat16),
                      preferred_element_type=jnp.float32)                  # (S, hd)
        ctx_scratch[:, pl.ds(h * hd, hd)] = ctx.astype(jnp.bfloat16)

    attn = jnp.dot(ctx_scratch[...], wo_ref[...],
                   preferred_element_type=jnp.float32) + bo_ref[...]       # (S, H)

    x = layernorm(x + attn, ln1g_ref, ln1b_ref)

    # ---- Feed forward, chunked over the sequence so the 4H intermediate
    #      is bounded to (seq_chunk, 4H).  Result goes straight back into
    #      the resident output/residual ref.
    for c0 in range(0, S, seq_chunk):
        xc = x[c0:c0 + seq_chunk]                                          # (chunk, H)
        ff = jnp.dot(xc.astype(jnp.bfloat16), w1_ref[...],
                     preferred_element_type=jnp.float32) + b1_ref[...]
        ff = jax.nn.gelu(ff)
        ff = jnp.dot(ff.astype(jnp.bfloat16), w2_ref[...],
                     preferred_element_type=jnp.float32) + b2_ref[...]
        yc = layernorm(xc + ff, ln2g_ref, ln2b_ref)
        hid_ref[pl.ds(c0, xc.shape[0]), :] = yc.astype(hid_ref.dtype)


# --------------------------------------------------------------------------
# Kernel 2: vocab projection + softmax (separate call, tiled over rows).
# --------------------------------------------------------------------------
def _vocab_softmax_kernel(h_ref, wout_ref, bout_ref, out_ref):
    logits = jnp.dot(h_ref[...], wout_ref[...],
                     preferred_element_type=jnp.float32) + bout_ref[...]
    logits = logits - jnp.max(logits, axis=-1, keepdims=True)
    e = jnp.exp(logits)
    out_ref[...] = (e / jnp.sum(e, axis=-1, keepdims=True)).astype(out_ref.dtype)


# --------------------------------------------------------------------------
# Wrapper
# --------------------------------------------------------------------------
def transformer_forward(token_ids, params, *, num_heads, num_layers, is_decoder=True):
    """Embedding lookup in plain JAX; all hot-path compute in Pallas kernels."""
    B, S = token_ids.shape
    H = params["emb_table"].shape[1]
    V = params["wout"].shape[1]
    F = params["w1"].shape[2]
    L = num_layers
    bf16 = jnp.bfloat16
    assert H % num_heads == 0

    # Embeddings: token embedding * sqrt(H) + interleaved sinusoidal PE.
    tok = params["emb_table"][token_ids] * jnp.float32(math.sqrt(H))       # (B, S, H)
    pos = jnp.arange(S, dtype=jnp.float32)[:, None]
    div = jnp.exp(jnp.arange(0, H, 2, dtype=jnp.float32) * (-math.log(10000.0) / H))
    ang = pos * div[None, :]                                               # (S, H/2)
    pe = jnp.stack([jnp.sin(ang), jnp.cos(ang)], axis=-1).reshape(S, H)    # interleaved
    embs = (tok + pe[None]).astype(bf16)                                   # (B, S, H)

    # Fused lane-dense QKV weights / biases + bf16 weight casts (done once).
    wqkv = jnp.concatenate([params["wq"], params["wk"], params["wv"]], axis=-1).astype(bf16)
    bqkv = jnp.concatenate([params["bq"], params["bk"], params["bv"]], axis=-1)
    wo = params["wo"].astype(bf16)
    w1 = params["w1"].astype(bf16)
    w2 = params["w2"].astype(bf16)
    wout = params["wout"].astype(bf16)

    vmem_limit = _vmem_limit_bytes()

    # FFN sequence chunk sized so the (chunk, F) f32 intermediate is bounded.
    ffn_budget = max(vmem_limit // 8, 1 << 20)
    seq_chunk = S
    for cand in (512, 256, 128, 64, 32, 16, 8):
        if S % cand == 0 and cand * F * 4 <= ffn_budget:
            seq_chunk = cand
            break

    layer_kernel = functools.partial(_layer_kernel, num_heads=num_heads,
                                     causal=is_decoder, seq_chunk=seq_chunk)

    grid_spec = pltpu.PrefetchScalarGridSpec(
        num_scalar_prefetch=0,
        grid=(B, num_layers),
        in_specs=[
            pl.BlockSpec((None, S, H), lambda b, l: (b, 0, 0)),         # embs (pipelined)
            pl.BlockSpec((None, H, 3 * H), lambda b, l: (l, 0, 0)),     # wqkv
            pl.BlockSpec((None, 1, 3 * H), lambda b, l: (l, 0, 0)),     # bqkv
            pl.BlockSpec((None, H, H), lambda b, l: (l, 0, 0)),         # wo
            pl.BlockSpec((None, 1, H), lambda b, l: (l, 0, 0)),         # bo
            pl.BlockSpec((None, 1, H), lambda b, l: (l, 0, 0)),         # ln1 gamma
            pl.BlockSpec((None, 1, H), lambda b, l: (l, 0, 0)),         # ln1 beta
            pl.BlockSpec((None, H, F), lambda b, l: (l, 0, 0)),         # w1
            pl.BlockSpec((None, 1, F), lambda b, l: (l, 0, 0)),         # b1
            pl.BlockSpec((None, F, H), lambda b, l: (l, 0, 0)),         # w2
            pl.BlockSpec((None, 1, H), lambda b, l: (l, 0, 0)),         # b2
            pl.BlockSpec((None, 1, H), lambda b, l: (l, 0, 0)),         # ln2 gamma
            pl.BlockSpec((None, 1, H), lambda b, l: (l, 0, 0)),         # ln2 beta
        ],
        # Output block index is constant across the layer axis -> it stays
        # resident in VMEM and doubles as the residual stream (no scratch).
        out_specs=pl.BlockSpec((None, S, H), lambda b, l: (b, 0, 0)),
        scratch_shapes=[pltpu.VMEM((S, H), jnp.bfloat16)],               # stacked ctx heads
    )

    hidden = pl.pallas_call(
        layer_kernel,
        out_shape=jax.ShapeDtypeStruct((B, S, H), bf16),
        grid_spec=grid_spec,
        compiler_params=pltpu.CompilerParams(
            dimension_semantics=("parallel", "arbitrary"),   # batch || cores, layers sequential
            vmem_limit_bytes=vmem_limit),
    )(embs, wqkv, bqkv, wo, params["bo"],
      params["ln1g"], params["ln1b"],
      w1, params["b1"], w2, params["b2"],
      params["ln2g"], params["ln2b"])

    # ---- Vocab projection + softmax: separate kernel, tiled over rows ----
    M = B * S
    h2d = hidden.reshape(M, H)                                           # bf16
    TM = M
    for t in (512, 256, 128, 64, 32, 16, 8):
        if M % t == 0 and 2 * t * V * 4 <= vmem_limit // 2:
            TM = t
            break
    # TODO(synk): for very large V, split the vocab axis with an online softmax.
    probs = pl.pallas_call(
        _vocab_softmax_kernel,
        out_shape=jax.ShapeDtypeStruct((M, V), jnp.float32),
        grid_spec=pltpu.PrefetchScalarGridSpec(
            num_scalar_prefetch=0,
            grid=(M // TM,),
            in_specs=[
                pl.BlockSpec((TM, H), lambda i: (i, 0)),
                pl.BlockSpec((H, V), lambda i: (0, 0)),
                pl.BlockSpec((1, V), lambda i: (0, 0)),
            ],
            out_specs=pl.BlockSpec((TM, V), lambda i: (i, 0)),
        ),
        compiler_params=pltpu.CompilerParams(
            dimension_semantics=("parallel",),
            vmem_limit_bytes=vmem_limit),
    )(h2d, wout, params["bout"])

    return probs.reshape(B, S, V)


def make_params(key, *, hidden_size, vocab_size, num_layers, ffn_mult=4):
    H, V, L = hidden_size, vocab_size, num_layers
    F = ffn_mult * H
    ks = jax.random.split(key, 16)

    def nrm(k, shape, scale=0.02):
        return (jax.random.normal(k, shape, jnp.float32) * scale).astype(jnp.float32)

    return dict(
        emb_table=nrm(ks[0], (V, H), 1.0 / math.sqrt(H)),
        wq=nrm(ks[1], (L, H, H)), wk=nrm(ks[2], (L, H, H)),
        wv=nrm(ks[3], (L, H, H)), wo=nrm(ks[4], (L, H, H)),
        bq=nrm(ks[5], (L, 1, H)), bk=nrm(ks[6], (L, 1, H)),
        bv=nrm(ks[7], (L, 1, H)), bo=nrm(ks[8], (L, 1, H)),
        ln1g=jnp.ones((L, 1, H), jnp.float32), ln1b=jnp.zeros((L, 1, H), jnp.float32),
        w1=nrm(ks[9], (L, H, F)), b1=nrm(ks[10], (L, 1, F)),
        w2=nrm(ks[11], (L, F, H)), b2=nrm(ks[12], (L, 1, H)),
        ln2g=jnp.ones((L, 1, H), jnp.float32), ln2b=jnp.zeros((L, 1, H), jnp.float32),
        wout=nrm(ks[13], (H, V)), bout=nrm(ks[14], (1, V)),
    )


if __name__ == "__main__":
    # Small, forward-consistent shapes.
    B, S = 2, 8
    hidden_size, vocab_size = 32, 64
    num_heads, num_layers = 4, 2

    key = jax.random.PRNGKey(0)
    k_tok, k_par = jax.random.split(key)

    token_ids = jax.random.randint(k_tok, (B, S), 0, vocab_size, dtype=jnp.int32)
    params = make_params(k_par, hidden_size=hidden_size, vocab_size=vocab_size,
                         num_layers=num_layers)

    probs = transformer_forward(token_ids, params,
                                num_heads=num_heads, num_layers=num_layers,
                                is_decoder=True)
    probs = jax.block_until_ready(probs)

    assert probs.shape == (B, S, vocab_size)
    row_sums = jnp.sum(probs, axis=-1)
    # bf16 matmul operands + bf16 residual stream => looser tolerance.
    assert bool(jnp.all(jnp.abs(row_sums - 1.0) < 1e-3)), "softmax rows must sum to 1"

    print("KERNEL_OK")
</pallas_src>

<mosaic_0001>
module attributes {stable_mosaic.version = 11 : i64} {
  func.func @_layer_kernel(%arg0: i32, %arg1: i32, %arg2: memref<1x8x32xbf16, #tpu.memory_space<vmem>>, %arg3: memref<1x32x96xbf16, #tpu.memory_space<vmem>>, %arg4: memref<1x1x96xf32, #tpu.memory_space<vmem>>, %arg5: memref<1x32x32xbf16, #tpu.memory_space<vmem>>, %arg6: memref<1x1x32xf32, #tpu.memory_space<vmem>>, %arg7: memref<1x1x32xf32, #tpu.memory_space<vmem>>, %arg8: memref<1x1x32xf32, #tpu.memory_space<vmem>>, %arg9: memref<1x32x128xbf16, #tpu.memory_space<vmem>>, %arg10: memref<1x1x128xf32, #tpu.memory_space<vmem>>, %arg11: memref<1x128x32xbf16, #tpu.memory_space<vmem>>, %arg12: memref<1x1x32xf32, #tpu.memory_space<vmem>>, %arg13: memref<1x1x32xf32, #tpu.memory_space<vmem>>, %arg14: memref<1x1x32xf32, #tpu.memory_space<vmem>>, %arg15: memref<1x8x32xbf16, #tpu.memory_space<vmem>>, %arg16: memref<8x32xbf16, #tpu.memory_space<vmem>>) attributes {dimension_semantics = [#tpu.dimension_semantics<parallel>, #tpu.dimension_semantics<arbitrary>], iteration_bounds = array<i64: 2, 2>, scalar_prefetch = 0 : i64, scratch_operands = 1 : i64, tpu.core_type = #tpu.core_type<tc>, window_params = [{transform_indices = @transform_0, window_bounds = array<i64: 1, 8, 32>}, {transform_indices = @transform_1, window_bounds = array<i64: 1, 32, 96>}, {transform_indices = @transform_2, window_bounds = array<i64: 1, 1, 96>}, {transform_indices = @transform_3, window_bounds = array<i64: 1, 32, 32>}, {transform_indices = @transform_4, window_bounds = array<i64: 1, 1, 32>}, {transform_indices = @transform_5, window_bounds = array<i64: 1, 1, 32>}, {transform_indices = @transform_6, window_bounds = array<i64: 1, 1, 32>}, {transform_indices = @transform_7, window_bounds = array<i64: 1, 32, 128>}, {transform_indices = @transform_8, window_bounds = array<i64: 1, 1, 128>}, {transform_indices = @transform_9, window_bounds = array<i64: 1, 128, 32>}, {transform_indices = @transform_10, window_bounds = array<i64: 1, 1, 32>}, {transform_indices = @transform_11, window_bounds = array<i64: 1, 1, 32>}, {transform_indices = @transform_12, window_bounds = array<i64: 1, 1, 32>}, {transform_indices = @transform_13, window_bounds = array<i64: 1, 8, 32>}]} {
    %c0_i32 = arith.constant 0 : i32
    %0 = arith.cmpi eq, %arg1, %c0_i32 : i32
    %1 = arith.extui %0 : i1 to i32
    %c0_i32_0 = arith.constant 0 : i32
    %2 = arith.cmpi ne, %1, %c0_i32_0 : i32
    scf.if %2 {
      %c0_90 = arith.constant 0 : index
      %c0_91 = arith.constant 0 : index
      %c0_92 = arith.constant 0 : index
      %208 = vector.load %arg2[%c0_90, %c0_91, %c0_92] : memref<1x8x32xbf16, #tpu.memory_space<vmem>>, vector<1x8x32xbf16>
      %209 = vector.shape_cast %208 : vector<1x8x32xbf16> to vector<8x32xbf16>
      %c0_93 = arith.constant 0 : index
      %c0_94 = arith.constant 0 : index
      %c0_95 = arith.constant 0 : index
      %210 = vector.load %arg15[%c0_93, %c0_94, %c0_95] : memref<1x8x32xbf16, #tpu.memory_space<vmem>>, vector<1x8x32xbf16>
      %211 = vector.shape_cast %210 : vector<1x8x32xbf16> to vector<8x32xbf16>
      %212 = vector.shape_cast %209 : vector<8x32xbf16> to vector<1x8x32xbf16>
      tpu.vector_store %arg15[%c0_93, %c0_94, %c0_95], %212 {strides = array<i32>} : memref<1x8x32xbf16, #tpu.memory_space<vmem>>, vector<1x8x32xbf16>,
    } else {
    }
    %c0 = arith.constant 0 : index
    %c0_1 = arith.constant 0 : index
    %c0_2 = arith.constant 0 : index
    %3 = vector.load %arg15[%c0, %c0_1, %c0_2] : memref<1x8x32xbf16, #tpu.memory_space<vmem>>, vector<1x8x32xbf16>
    %4 = vector.shape_cast %3 : vector<1x8x32xbf16> to vector<8x32xbf16>
    %5 = arith.extf %4 : vector<8x32xbf16> to vector<8x32xf32>
    %6 = arith.truncf %5 : vector<8x32xf32> to vector<8x32xbf16>
    %c0_3 = arith.constant 0 : index
    %c0_4 = arith.constant 0 : index
    %c0_5 = arith.constant 0 : index
    %7 = vector.load %arg3[%c0_3, %c0_4, %c0_5] : memref<1x32x96xbf16, #tpu.memory_space<vmem>>, vector<1x32x96xbf16>
    %8 = vector.shape_cast %7 : vector<1x32x96xbf16> to vector<32x96xbf16>
    %cst = arith.constant dense<0.000000e+00> : vector<8x96xf32>
    %9 = tpu.matmul %6, %8, %cst {dimension_numbers = #tpu.dot_dimension_numbers<[1], [0], [0], [1], [0, 0, 1, 1], [], []>} : vector<8x32xbf16>, vector<32x96xbf16>, vector<8x96xf32> -> vector<8x96xf32>
    %c0_6 = arith.constant 0 : index
    %c0_7 = arith.constant 0 : index
    %c0_8 = arith.constant 0 : index
    %10 = vector.load %arg4[%c0_6, %c0_7, %c0_8] : memref<1x1x96xf32, #tpu.memory_space<vmem>>, vector<1x1x96xf32>
    %11 = vector.shape_cast %10 : vector<1x1x96xf32> to vector<1x96xf32>
    %12 = vector.broadcast %11 : vector<1x96xf32> to vector<8x96xf32>
    %13 = arith.addf %9, %12 : vector<8x96xf32>
    %14 = tpu.iota {dimensions = array<i32: 0>} : vector<8x8xi32>
    %15 = tpu.iota {dimensions = array<i32: 1>} : vector<8x8xi32>
    %16 = arith.cmpi sle, %15, %14 : vector<8x8xi32>
    %17 = vector.extract_strided_slice %13 {offsets = [0, 0], sizes = [8, 8], strides = [1, 1]} : vector<8x96xf32> to vector<8x8xf32>
    %18 = vector.extract_strided_slice %13 {offsets = [0, 32], sizes = [8, 8], strides = [1, 1]} : vector<8x96xf32> to vector<8x8xf32>
    %19 = vector.extract_strided_slice %13 {offsets = [0, 64], sizes = [8, 8], strides = [1, 1]} : vector<8x96xf32> to vector<8x8xf32>
    %20 = arith.truncf %17 : vector<8x8xf32> to vector<8x8xbf16>
    %21 = arith.truncf %18 : vector<8x8xf32> to vector<8x8xbf16>
    %cst_9 = arith.constant dense<0.000000e+00> : vector<8x8xf32>
    %22 = tpu.matmul %20, %21, %cst_9 {dimension_numbers = #tpu.dot_dimension_numbers<[1], [1], [0], [0], [0, 0, 1, 0], [], []>} : vector<8x8xbf16>, vector<8x8xbf16>, vector<8x8xf32> -> vector<8x8xf32>
    %cst_10 = arith.constant 0.353553385 : f32
    %23 = vector.broadcast %cst_10 : f32 to vector<8x8xf32>
    %24 = arith.mulf %22, %23 : vector<8x8xf32>
    %cst_11 = arith.constant -1.000000e+30 : f32
    %25 = vector.broadcast %cst_11 : f32 to vector<8x8xf32>
    %26 = arith.select %16, %24, %25 : vector<8x8xi1>, vector<8x8xf32>
    %cst_12 = arith.constant dense<0xFF800000> : vector<8xf32>
    %27 = vector.multi_reduction <maximumf>, %26, %cst_12 [1] : vector<8x8xf32> to vector<8xf32>
    %28 = vector.shape_cast %27 : vector<8xf32> to vector<8x1xf32>
    %29 = vector.broadcast %28 : vector<8x1xf32> to vector<8x8xf32>
    %30 = arith.subf %26, %29 : vector<8x8xf32>
    %31 = math.exp %30 : vector<8x8xf32>
    %cst_13 = arith.constant dense<0.000000e+00> : vector<8xf32>
    %32 = vector.multi_reduction <add>, %31, %cst_13 [1] : vector<8x8xf32> to vector<8xf32>
    %33 = vector.shape_cast %32 : vector<8xf32> to vector<8x1xf32>
    %34 = vector.broadcast %33 : vector<8x1xf32> to vector<8x8xf32>
    %35 = arith.divf %31, %34 : vector<8x8xf32>
    %36 = arith.truncf %35 : vector<8x8xf32> to vector<8x8xbf16>
    %37 = arith.truncf %19 : vector<8x8xf32> to vector<8x8xbf16>
    %cst_14 = arith.constant dense<0.000000e+00> : vector<8x8xf32>
    %38 = tpu.matmul %36, %37, %cst_14 {dimension_numbers = #tpu.dot_dimension_numbers<[1], [0], [0], [1], [0, 0, 1, 1], [], []>} : vector<8x8xbf16>, vector<8x8xbf16>, vector<8x8xf32> -> vector<8x8xf32>
    %39 = arith.truncf %38 : vector<8x8xf32> to vector<8x8xbf16>
    %c0_15 = arith.constant 0 : index
    %c0_16 = arith.constant 0 : index
    %40 = vector.load %arg16[%c0_15, %c0_16] : memref<8x32xbf16, #tpu.memory_space<vmem>>, vector<8x8xbf16>
    tpu.vector_store %arg16[%c0_15, %c0_16], %39 {strides = array<i32>} : memref<8x32xbf16, #tpu.memory_space<vmem>>, vector<8x8xbf16>,
    %41 = vector.extract_strided_slice %13 {offsets = [0, 8], sizes = [8, 8], strides = [1, 1]} : vector<8x96xf32> to vector<8x8xf32>
    %42 = vector.extract_strided_slice %13 {offsets = [0, 40], sizes = [8, 8], strides = [1, 1]} : vector<8x96xf32> to vector<8x8xf32>
    %43 = vector.extract_strided_slice %13 {offsets = [0, 72], sizes = [8, 8], strides = [1, 1]} : vector<8x96xf32> to vector<8x8xf32>
    %44 = arith.truncf %41 : vector<8x8xf32> to vector<8x8xbf16>
    %45 = arith.truncf %42 : vector<8x8xf32> to vector<8x8xbf16>
    %cst_17 = arith.constant dense<0.000000e+00> : vector<8x8xf32>
    %46 = tpu.matmul %44, %45, %cst_17 {dimension_numbers = #tpu.dot_dimension_numbers<[1], [1], [0], [0], [0, 0, 1, 0], [], []>} : vector<8x8xbf16>, vector<8x8xbf16>, vector<8x8xf32> -> vector<8x8xf32>
    %cst_18 = arith.constant 0.353553385 : f32
    %47 = vector.broadcast %cst_18 : f32 to vector<8x8xf32>
    %48 = arith.mulf %46, %47 : vector<8x8xf32>
    %cst_19 = arith.constant -1.000000e+30 : f32
    %49 = vector.broadcast %cst_19 : f32 to vector<8x8xf32>
    %50 = arith.select %16, %48, %49 : vector<8x8xi1>, vector<8x8xf32>
    %cst_20 = arith.constant dense<0xFF800000> : vector<8xf32>
    %51 = vector.multi_reduction <maximumf>, %50, %cst_20 [1] : vector<8x8xf32> to vector<8xf32>
    %52 = vector.shape_cast %51 : vector<8xf32> to vector<8x1xf32>
    %53 = vector.broadcast %52 : vector<8x1xf32> to vector<8x8xf32>
    %54 = arith.subf %50, %53 : vector<8x8xf32>
    %55 = math.exp %54 : vector<8x8xf32>
    %cst_21 = arith.constant dense<0.000000e+00> : vector<8xf32>
    %56 = vector.multi_reduction <add>, %55, %cst_21 [1] : vector<8x8xf32> to vector<8xf32>
    %57 = vector.shape_cast %56 : vector<8xf32> to vector<8x1xf32>
    %58 = vector.broadcast %57 : vector<8x1xf32> to vector<8x8xf32>
    %59 = arith.divf %55, %58 : vector<8x8xf32>
    %60 = arith.truncf %59 : vector<8x8xf32> to vector<8x8xbf16>
    %61 = arith.truncf %43 : vector<8x8xf32> to vector<8x8xbf16>
    %cst_22 = arith.constant dense<0.000000e+00> : vector<8x8xf32>
    %62 = tpu.matmul %60, %61, %cst_22 {dimension_numbers = #tpu.dot_dimension_numbers<[1], [0], [0], [1], [0, 0, 1, 1], [], []>} : vector<8x8xbf16>, vector<8x8xbf16>, vector<8x8xf32> -> vector<8x8xf32>
    %63 = arith.truncf %62 : vector<8x8xf32> to vector<8x8xbf16>
    %c0_23 = arith.constant 0 : index
    %c8 = arith.constant 8 : index
    %64 = vector.load %arg16[%c0_23, %c8] : memref<8x32xbf16, #tpu.memory_space<vmem>>, vector<8x8xbf16>
    tpu.vector_store %arg16[%c0_23, %c8], %63 {strides = array<i32>} : memref<8x32xbf16, #tpu.memory_space<vmem>>, vector<8x8xbf16>,
    %65 = vector.extract_strided_slice %13 {offsets = [0, 16], sizes = [8, 8], strides = [1, 1]} : vector<8x96xf32> to vector<8x8xf32>
    %66 = vector.extract_strided_slice %13 {offsets = [0, 48], sizes = [8, 8], strides = [1, 1]} : vector<8x96xf32> to vector<8x8xf32>
    %67 = vector.extract_strided_slice %13 {offsets = [0, 80], sizes = [8, 8], strides = [1, 1]} : vector<8x96xf32> to vector<8x8xf32>
    %68 = arith.truncf %65 : vector<8x8xf32> to vector<8x8xbf16>
    %69 = arith.truncf %66 : vector<8x8xf32> to vector<8x8xbf16>
    %cst_24 = arith.constant dense<0.000000e+00> : vector<8x8xf32>
    %70 = tpu.matmul %68, %69, %cst_24 {dimension_numbers = #tpu.dot_dimension_numbers<[1], [1], [0], [0], [0, 0, 1, 0], [], []>} : vector<8x8xbf16>, vector<8x8xbf16>, vector<8x8xf32> -> vector<8x8xf32>
    %cst_25 = arith.constant 0.353553385 : f32
    %71 = vector.broadcast %cst_25 : f32 to vector<8x8xf32>
    %72 = arith.mulf %70, %71 : vector<8x8xf32>
    %cst_26 = arith.constant -1.000000e+30 : f32
    %73 = vector.broadcast %cst_26 : f32 to vector<8x8xf32>
    %74 = arith.select %16, %72, %73 : vector<8x8xi1>, vector<8x8xf32>
    %cst_27 = arith.constant dense<0xFF800000> : vector<8xf32>
    %75 = vector.multi_reduction <maximumf>, %74, %cst_27 [1] : vector<8x8xf32> to vector<8xf32>
    %76 = vector.shape_cast %75 : vector<8xf32> to vector<8x1xf32>
    %77 = vector.broadcast %76 : vector<8x1xf32> to vector<8x8xf32>
    %78 = arith.subf %74, %77 : vector<8x8xf32>
    %79 = math.exp %78 : vector<8x8xf32>
    %cst_28 = arith.constant dense<0.000000e+00> : vector<8xf32>
    %80 = vector.multi_reduction <add>, %79, %cst_28 [1] : vector<8x8xf32> to vector<8xf32>
    %81 = vector.shape_cast %80 : vector<8xf32> to vector<8x1xf32>
    %82 = vector.broadcast %81 : vector<8x1xf32> to vector<8x8xf32>
    %83 = arith.divf %79, %82 : vector<8x8xf32>
    %84 = arith.truncf %83 : vector<8x8xf32> to vector<8x8xbf16>
    %85 = arith.truncf %67 : vector<8x8xf32> to vector<8x8xbf16>
    %cst_29 = arith.constant dense<0.000000e+00> : vector<8x8xf32>
    %86 = tpu.matmul %84, %85, %cst_29 {dimension_numbers = #tpu.dot_dimension_numbers<[1], [0], [0], [1], [0, 0, 1, 1], [], []>} : vector<8x8xbf16>, vector<8x8xbf16>, vector<8x8xf32> -> vector<8x8xf32>
    %87 = arith.truncf %86 : vector<8x8xf32> to vector<8x8xbf16>
    %c0_30 = arith.constant 0 : index
    %c16 = arith.constant 16 : index
    %88 = vector.load %arg16[%c0_30, %c16] : memref<8x32xbf16, #tpu.memory_space<vmem>>, vector<8x8xbf16>
    tpu.vector_store %arg16[%c0_30, %c16], %87 {strides = array<i32>} : memref<8x32xbf16, #tpu.memory_space<vmem>>, vector<8x8xbf16>,
    %89 = vector.extract_strided_slice %13 {offsets = [0, 24], sizes = [8, 8], strides = [1, 1]} : vector<8x96xf32> to vector<8x8xf32>
    %90 = vector.extract_strided_slice %13 {offsets = [0, 56], sizes = [8, 8], strides = [1, 1]} : vector<8x96xf32> to vector<8x8xf32>
    %91 = vector.extract_strided_slice %13 {offsets = [0, 88], sizes = [8, 8], strides = [1, 1]} : vector<8x96xf32> to vector<8x8xf32>
    %92 = arith.truncf %89 : vector<8x8xf32> to vector<8x8xbf16>
    %93 = arith.truncf %90 : vector<8x8xf32> to vector<8x8xbf16>
    %cst_31 = arith.constant dense<0.000000e+00> : vector<8x8xf32>
    %94 = tpu.matmul %92, %93, %cst_31 {dimension_numbers = #tpu.dot_dimension_numbers<[1], [1], [0], [0], [0, 0, 1, 0], [], []>} : vector<8x8xbf16>, vector<8x8xbf16>, vector<8x8xf32> -> vector<8x8xf32>
    %cst_32 = arith.constant 0.353553385 : f32
    %95 = vector.broadcast %cst_32 : f32 to vector<8x8xf32>
    %96 = arith.mulf %94, %95 : vector<8x8xf32>
    %cst_33 = arith.constant -1.000000e+30 : f32
    %97 = vector.broadcast %cst_33 : f32 to vector<8x8xf32>
    %98 = arith.select %16, %96, %97 : vector<8x8xi1>, vector<8x8xf32>
    %cst_34 = arith.constant dense<0xFF800000> : vector<8xf32>
    %99 = vector.multi_reduction <maximumf>, %98, %cst_34 [1] : vector<8x8xf32> to vector<8xf32>
    %100 = vector.shape_cast %99 : vector<8xf32> to vector<8x1xf32>
    %101 = vector.broadcast %100 : vector<8x1xf32> to vector<8x8xf32>
    %102 = arith.subf %98, %101 : vector<8x8xf32>
    %103 = math.exp %102 : vector<8x8xf32>
    %cst_35 = arith.constant dense<0.000000e+00> : vector<8xf32>
    %104 = vector.multi_reduction <add>, %103, %cst_35 [1] : vector<8x8xf32> to vector<8xf32>
    %105 = vector.shape_cast %104 : vector<8xf32> to vector<8x1xf32>
    %106 = vector.broadcast %105 : vector<8x1xf32> to vector<8x8xf32>
    %107 = arith.divf %103, %106 : vector<8x8xf32>
    %108 = arith.truncf %107 : vector<8x8xf32> to vector<8x8xbf16>
    %109 = arith.truncf %91 : vector<8x8xf32> to vector<8x8xbf16>
    %cst_36 = arith.constant dense<0.000000e+00> : vector<8x8xf32>
    %110 = tpu.matmul %108, %109, %cst_36 {dimension_numbers = #tpu.dot_dimension_numbers<[1], [0], [0], [1], [0, 0, 1, 1], [], []>} : vector<8x8xbf16>, vector<8x8xbf16>, vector<8x8xf32> -> vector<8x8xf32>
    %111 = arith.truncf %110 : vector<8x8xf32> to vector<8x8xbf16>
    %c0_37 = arith.constant 0 : index
    %c24 = arith.constant 24 : index
    %112 = vector.load %arg16[%c0_37, %c24] : memref<8x32xbf16, #tpu.memory_space<vmem>>, vector<8x8xbf16>
    tpu.vector_store %arg16[%c0_37, %c24], %111 {strides = array<i32>} : memref<8x32xbf16, #tpu.memory_space<vmem>>, vector<8x8xbf16>,
    %c0_38 = arith.constant 0 : index
    %c0_39 = arith.constant 0 : index
    %113 = vector.load %arg16[%c0_38, %c0_39] : memref<8x32xbf16, #tpu.memory_space<vmem>>, vector<8x32xbf16>
    %c0_40 = arith.constant 0 : index
    %c0_41 = arith.constant 0 : index
    %c0_42 = arith.constant 0 : index
    %114 = vector.load %arg5[%c0_40, %c0_41, %c0_42] : memref<1x32x32xbf16, #tpu.memory_space<vmem>>, vector<1x32x32xbf16>
    %115 = vector.shape_cast %114 : vector<1x32x32xbf16> to vector<32x32xbf16>
    %cst_43 = arith.constant dense<0.000000e+00> : vector<8x32xf32>
    %116 = tpu.matmul %113, %115, %cst_43 {dimension_numbers = #tpu.dot_dimension_numbers<[1], [0], [0], [1], [0, 0, 1, 1], [], []>} : vector<8x32xbf16>, vector<32x32xbf16>, vector<8x32xf32> -> vector<8x32xf32>
    %c0_44 = arith.constant 0 : index
    %c0_45 = arith.constant 0 : index
    %c0_46 = arith.constant 0 : index
    %117 = vector.load %arg6[%c0_44, %c0_45, %c0_46] : memref<1x1x32xf32, #tpu.memory_space<vmem>>, vector<1x1x32xf32>
    %118 = vector.shape_cast %117 : vector<1x1x32xf32> to vector<1x32xf32>
    %119 = vector.broadcast %118 : vector<1x32xf32> to vector<8x32xf32>
    %120 = arith.addf %116, %119 : vector<8x32xf32>
    %121 = arith.addf %5, %120 : vector<8x32xf32>
    %cst_47 = arith.constant dense<0.000000e+00> : vector<8xf32>
    %122 = vector.multi_reduction <add>, %121, %cst_47 [1] : vector<8x32xf32> to vector<8xf32>
    %123 = vector.shape_cast %122 : vector<8xf32> to vector<8x1xf32>
    %cst_48 = arith.constant 3.200000e+01 : f32
    %124 = vector.broadcast %cst_48 : f32 to vector<8x1xf32>
    %125 = arith.divf %123, %124 : vector<8x1xf32>
    %126 = vector.broadcast %125 : vector<8x1xf32> to vector<8x32xf32>
    %127 = arith.subf %121, %126 : vector<8x32xf32>
    %128 = arith.mulf %127, %127 : vector<8x32xf32>
    %cst_49 = arith.constant dense<0.000000e+00> : vector<8xf32>
    %129 = vector.multi_reduction <add>, %128, %cst_49 [1] : vector<8x32xf32> to vector<8xf32>
    %130 = vector.shape_cast %129 : vector<8xf32> to vector<8x1xf32>
    %cst_50 = arith.constant 3.200000e+01 : f32
    %131 = vector.broadcast %cst_50 : f32 to vector<8x1xf32>
    %132 = arith.divf %130, %131 : vector<8x1xf32>
    %133 = vector.broadcast %125 : vector<8x1xf32> to vector<8x32xf32>
    %134 = arith.subf %121, %133 : vector<8x32xf32>
    %cst_51 = arith.constant 9.99999974E-6 : f32
    %135 = vector.broadcast %cst_51 : f32 to vector<8x1xf32>
    %136 = arith.addf %132, %135 : vector<8x1xf32>
    %137 = math.rsqrt %136 : vector<8x1xf32>
    %138 = vector.broadcast %137 : vector<8x1xf32> to vector<8x32xf32>
    %139 = arith.mulf %134, %138 : vector<8x32xf32>
    %c0_52 = arith.constant 0 : index
    %c0_53 = arith.constant 0 : index
    %c0_54 = arith.constant 0 : index
    %140 = vector.load %arg7[%c0_52, %c0_53, %c0_54] : memref<1x1x32xf32, #tpu.memory_space<vmem>>, vector<1x1x32xf32>
    %141 = vector.shape_cast %140 : vector<1x1x32xf32> to vector<1x32xf32>
    %142 = vector.broadcast %141 : vector<1x32xf32> to vector<8x32xf32>
    %143 = arith.mulf %139, %142 : vector<8x32xf32>
    %c0_55 = arith.constant 0 : index
    %c0_56 = arith.constant 0 : index
    %c0_57 = arith.constant 0 : index
    %144 = vector.load %arg8[%c0_55, %c0_56, %c0_57] : memref<1x1x32xf32, #tpu.memory_space<vmem>>, vector<1x1x32xf32>
    %145 = vector.shape_cast %144 : vector<1x1x32xf32> to vector<1x32xf32>
    %146 = vector.broadcast %145 : vector<1x32xf32> to vector<8x32xf32>
    %147 = arith.addf %143, %146 : vector<8x32xf32>
    %148 = arith.truncf %147 : vector<8x32xf32> to vector<8x32xbf16>
    %c0_58 = arith.constant 0 : index
    %c0_59 = arith.constant 0 : index
    %c0_60 = arith.constant 0 : index
    %149 = vector.load %arg9[%c0_58, %c0_59, %c0_60] : memref<1x32x128xbf16, #tpu.memory_space<vmem>>, vector<1x32x128xbf16>
    %150 = vector.shape_cast %149 : vector<1x32x128xbf16> to vector<32x128xbf16>
    %cst_61 = arith.constant dense<0.000000e+00> : vector<8x128xf32>
    %151 = tpu.matmul %148, %150, %cst_61 {dimension_numbers = #tpu.dot_dimension_numbers<[1], [0], [0], [1], [0, 0, 1, 1], [], []>} : vector<8x32xbf16>, vector<32x128xbf16>, vector<8x128xf32> -> vector<8x128xf32>
    %c0_62 = arith.constant 0 : index
    %c0_63 = arith.constant 0 : index
    %c0_64 = arith.constant 0 : index
    %152 = vector.load %arg10[%c0_62, %c0_63, %c0_64] : memref<1x1x128xf32, #tpu.memory_space<vmem>>, vector<1x1x128xf32>
    %153 = vector.shape_cast %152 : vector<1x1x128xf32> to vector<1x128xf32>
    %154 = vector.broadcast %153 : vector<1x128xf32> to vector<8x128xf32>
    %155 = arith.addf %151, %154 : vector<8x128xf32>
    %156 = arith.mulf %155, %155 : vector<8x128xf32>
    %157 = arith.mulf %155, %156 : vector<8x128xf32>
    %cst_65 = arith.constant 4.471500e-02 : f32
    %158 = vector.broadcast %cst_65 : f32 to vector<8x128xf32>
    %159 = arith.mulf %158, %157 : vector<8x128xf32>
    %160 = arith.addf %155, %159 : vector<8x128xf32>
    %cst_66 = arith.constant 0.797884583 : f32
    %161 = vector.broadcast %cst_66 : f32 to vector<8x128xf32>
    %162 = arith.mulf %161, %160 : vector<8x128xf32>
    %163 = math.tanh %162 : vector<8x128xf32>
    %cst_67 = arith.constant 1.000000e+00 : f32
    %164 = vector.broadcast %cst_67 : f32 to vector<8x128xf32>
    %165 = arith.addf %164, %163 : vector<8x128xf32>
    %cst_68 = arith.constant 5.000000e-01 : f32
    %166 = vector.broadcast %cst_68 : f32 to vector<8x128xf32>
    %167 = arith.mulf %166, %165 : vector<8x128xf32>
    %168 = arith.mulf %155, %167 : vector<8x128xf32>
    %169 = arith.truncf %168 : vector<8x128xf32> to vector<8x128xbf16>
    %c0_69 = arith.constant 0 : index
    %c0_70 = arith.constant 0 : index
    %c0_71 = arith.constant 0 : index
    %170 = vector.load %arg11[%c0_69, %c0_70, %c0_71] : memref<1x128x32xbf16, #tpu.memory_space<vmem>>, vector<1x128x32xbf16>
    %171 = vector.shape_cast %170 : vector<1x128x32xbf16> to vector<128x32xbf16>
    %cst_72 = arith.constant dense<0.000000e+00> : vector<8x32xf32>
    %172 = tpu.matmul %169, %171, %cst_72 {dimension_numbers = #tpu.dot_dimension_numbers<[1], [0], [0], [1], [0, 0, 1, 1], [], []>} : vector<8x128xbf16>, vector<128x32xbf16>, vector<8x32xf32> -> vector<8x32xf32>
    %c0_73 = arith.constant 0 : index
    %c0_74 = arith.constant 0 : index
    %c0_75 = arith.constant 0 : index
    %173 = vector.load %arg12[%c0_73, %c0_74, %c0_75] : memref<1x1x32xf32, #tpu.memory_space<vmem>>, vector<1x1x32xf32>
    %174 = vector.shape_cast %173 : vector<1x1x32xf32> to vector<1x32xf32>
    %175 = vector.broadcast %174 : vector<1x32xf32> to vector<8x32xf32>
    %176 = arith.addf %172, %175 : vector<8x32xf32>
    %177 = arith.addf %147, %176 : vector<8x32xf32>
    %cst_76 = arith.constant dense<0.000000e+00> : vector<8xf32>
    %178 = vector.multi_reduction <add>, %177, %cst_76 [1] : vector<8x32xf32> to vector<8xf32>
    %179 = vector.shape_cast %178 : vector<8xf32> to vector<8x1xf32>
    %cst_77 = arith.constant 3.200000e+01 : f32
    %180 = vector.broadcast %cst_77 : f32 to vector<8x1xf32>
    %181 = arith.divf %179, %180 : vector<8x1xf32>
    %182 = vector.broadcast %181 : vector<8x1xf32> to vector<8x32xf32>
    %183 = arith.subf %177, %182 : vector<8x32xf32>
    %184 = arith.mulf %183, %183 : vector<8x32xf32>
    %cst_78 = arith.constant dense<0.000000e+00> : vector<8xf32>
    %185 = vector.multi_reduction <add>, %184, %cst_78 [1] : vector<8x32xf32> to vector<8xf32>
    %186 = vector.shape_cast %185 : vector<8xf32> to vector<8x1xf32>
    %cst_79 = arith.constant 3.200000e+01 : f32
    %187 = vector.broadcast %cst_79 : f32 to vector<8x1xf32>
    %188 = arith.divf %186, %187 : vector<8x1xf32>
    %189 = vector.broadcast %181 : vector<8x1xf32> to vector<8x32xf32>
    %190 = arith.subf %177, %189 : vector<8x32xf32>
    %cst_80 = arith.constant 9.99999974E-6 : f32
    %191 = vector.broadcast %cst_80 : f32 to vector<8x1xf32>
    %192 = arith.addf %188, %191 : vector<8x1xf32>
    %193 = math.rsqrt %192 : vector<8x1xf32>
    %194 = vector.broadcast %193 : vector<8x1xf32> to vector<8x32xf32>
    %195 = arith.mulf %190, %194 : vector<8x32xf32>
    %c0_81 = arith.constant 0 : index
    %c0_82 = arith.constant 0 : index
    %c0_83 = arith.constant 0 : index
    %196 = vector.load %arg13[%c0_81, %c0_82, %c0_83] : memref<1x1x32xf32, #tpu.memory_space<vmem>>, vector<1x1x32xf32>
    %197 = vector.shape_cast %196 : vector<1x1x32xf32> to vector<1x32xf32>
    %198 = vector.broadcast %197 : vector<1x32xf32> to vector<8x32xf32>
    %199 = arith.mulf %195, %198 : vector<8x32xf32>
    %c0_84 = arith.constant 0 : index
    %c0_85 = arith.constant 0 : index
    %c0_86 = arith.constant 0 : index
    %200 = vector.load %arg14[%c0_84, %c0_85, %c0_86] : memref<1x1x32xf32, #tpu.memory_space<vmem>>, vector<1x1x32xf32>
    %201 = vector.shape_cast %200 : vector<1x1x32xf32> to vector<1x32xf32>
    %202 = vector.broadcast %201 : vector<1x32xf32> to vector<8x32xf32>
    %203 = arith.addf %199, %202 : vector<8x32xf32>
    %204 = arith.truncf %203 : vector<8x32xf32> to vector<8x32xbf16>
    %c0_87 = arith.constant 0 : index
    %c0_88 = arith.constant 0 : index
    %c0_89 = arith.constant 0 : index
    %205 = vector.load %arg15[%c0_87, %c0_88, %c0_89] : memref<1x8x32xbf16, #tpu.memory_space<vmem>>, vector<1x8x32xbf16>
    %206 = vector.shape_cast %205 : vector<1x8x32xbf16> to vector<8x32xbf16>
    %207 = vector.shape_cast %204 : vector<8x32xbf16> to vector<1x8x32xbf16>
    tpu.vector_store %arg15[%c0_87, %c0_88, %c0_89], %207 {strides = array<i32>} : memref<1x8x32xbf16, #tpu.memory_space<vmem>>, vector<1x8x32xbf16>,
    return
  }
  func.func @transform_0(%arg0: i32, %arg1: i32) -> (i32, i32, i32) {
    %c0_i32 = arith.constant 0 : i32
    %c0_i32_0 = arith.constant 0 : i32
    %c0_i32_1 = arith.constant 0 : i32
    return %arg0, %c0_i32, %c0_i32_0 : i32, i32, i32
  }
  func.func @transform_1(%arg0: i32, %arg1: i32) -> (i32, i32, i32) {
    %c0_i32 = arith.constant 0 : i32
    %c0_i32_0 = arith.constant 0 : i32
    %c0_i32_1 = arith.constant 0 : i32
    return %arg1, %c0_i32, %c0_i32_0 : i32, i32, i32
  }
  func.func @transform_2(%arg0: i32, %arg1: i32) -> (i32, i32, i32) {
    %c0_i32 = arith.constant 0 : i32
    %c0_i32_0 = arith.constant 0 : i32
    %c0_i32_1 = arith.constant 0 : i32
    return %arg1, %c0_i32, %c0_i32_0 : i32, i32, i32
  }
  func.func @transform_3(%arg0: i32, %arg1: i32) -> (i32, i32, i32) {
    %c0_i32 = arith.constant 0 : i32
    %c0_i32_0 = arith.constant 0 : i32
    %c0_i32_1 = arith.constant 0 : i32
    return %arg1, %c0_i32, %c0_i32_0 : i32, i32, i32
  }
  func.func @transform_4(%arg0: i32, %arg1: i32) -> (i32, i32, i32) {
    %c0_i32 = arith.constant 0 : i32
    %c0_i32_0 = arith.constant 0 : i32
    %c0_i32_1 = arith.constant 0 : i32
    return %arg1, %c0_i32, %c0_i32_0 : i32, i32, i32
  }
  func.func @transform_5(%arg0: i32, %arg1: i32) -> (i32, i32, i32) {
    %c0_i32 = arith.constant 0 : i32
    %c0_i32_0 = arith.constant 0 : i32
    %c0_i32_1 = arith.constant 0 : i32
    return %arg1, %c0_i32, %c0_i32_0 : i32, i32, i32
  }
  func.func @transform_6(%arg0: i32, %arg1: i32) -> (i32, i32, i32) {
    %c0_i32 = arith.constant 0 : i32
    %c0_i32_0 = arith.constant 0 : i32
    %c0_i32_1 = arith.constant 0 : i32
    return %arg1, %c0_i32, %c0_i32_0 : i32, i32, i32
  }
  func.func @transform_7(%arg0: i32, %arg1: i32) -> (i32, i32, i32) {
    %c0_i32 = arith.constant 0 : i32
    %c0_i32_0 = arith.constant 0 : i32
    %c0_i32_1 = arith.constant 0 : i32
    return %arg1, %c0_i32, %c0_i32_0 : i32, i32, i32
  }
  func.func @transform_8(%arg0: i32, %arg1: i32) -> (i32, i32, i32) {
    %c0_i32 = arith.constant 0 : i32
    %c0_i32_0 = arith.constant 0 : i32
    %c0_i32_1 = arith.constant 0 : i32
    return %arg1, %c0_i32, %c0_i32_0 : i32, i32, i32
  }
  func.func @transform_9(%arg0: i32, %arg1: i32) -> (i32, i32, i32) {
    %c0_i32 = arith.constant 0 : i32
    %c0_i32_0 = arith.constant 0 : i32
    %c0_i32_1 = arith.constant 0 : i32
    return %arg1, %c0_i32, %c0_i32_0 : i32, i32, i32
  }
  func.func @transform_10(%arg0: i32, %arg1: i32) -> (i32, i32, i32) {
    %c0_i32 = arith.constant 0 : i32
    %c0_i32_0 = arith.constant 0 : i32
    %c0_i32_1 = arith.constant 0 : i32
    return %arg1, %c0_i32, %c0_i32_0 : i32, i32, i32
  }
  func.func @transform_11(%arg0: i32, %arg1: i32) -> (i32, i32, i32) {
    %c0_i32 = arith.constant 0 : i32
    %c0_i32_0 = arith.constant 0 : i32
    %c0_i32_1 = arith.constant 0 : i32
    return %arg1, %c0_i32, %c0_i32_0 : i32, i32, i32
  }
  func.func @transform_12(%arg0: i32, %arg1: i32) -> (i32, i32, i32) {
    %c0_i32 = arith.constant 0 : i32
    %c0_i32_0 = arith.constant 0 : i32
    %c0_i32_1 = arith.constant 0 : i32
    return %arg1, %c0_i32, %c0_i32_0 : i32, i32, i32
  }
  func.func @transform_13(%arg0: i32, %arg1: i32) -> (i32, i32, i32) {
    %c0_i32 = arith.constant 0 : i32
    %c0_i32_0 = arith.constant 0 : i32
    %c0_i32_1 = arith.constant 0 : i32
    return %arg0, %c0_i32, %c0_i32_0 : i32, i32, i32
  }
}

</mosaic_0001>

<llo_original>
// kernel: tpu_custom_call.1
$region0: #{tpu_custom_call.1}
  #allocation0 [shape = 'u32[]', space=smem, size = 0x4, offset = 0x4, fixed_abs, tag = 'smem constant byte address 0x4 - core index']
  #allocation1 [shape = 'u32[144,128]{1,0:T(1,128)}', space=vmem, size = 0x12000, scoped, tag = 'internal scratch']
  #allocation2 [shape = 'bf16[8,32]{1,0:T(8,128)(2,1)}', space=vmem, size = 0x800, scoped, tag = 'scratch operand']
  %s0 = inlined_call_operand.vmem [shape: bf16[2,8,32], index: 0, kind: input, shape index: {}]
  %s1 = inlined_call_operand.vmem [shape: bf16[2,32,96], index: 1, kind: input, shape index: {}]
  %s2 = inlined_call_operand.vmem [shape: f32[2,1,96], index: 2, kind: input, shape index: {}]
  %s3 = inlined_call_operand.vmem [shape: bf16[2,32,32], index: 3, kind: input, shape index: {}]
  %s4 = inlined_call_operand.vmem [shape: f32[2,1,32], index: 4, kind: input, shape index: {}]
  %s5 = inlined_call_operand.vmem [shape: f32[2,1,32], index: 5, kind: input, shape index: {}]
  %s6 = inlined_call_operand.vmem [shape: f32[2,1,32], index: 6, kind: input, shape index: {}]
  %s7 = inlined_call_operand.vmem [shape: bf16[2,32,128], index: 7, kind: input, shape index: {}]
  %s8 = inlined_call_operand.vmem [shape: f32[2,1,128], index: 8, kind: input, shape index: {}]
  %s9 = inlined_call_operand.vmem [shape: bf16[2,128,32], index: 9, kind: input, shape index: {}]
  %s10 = inlined_call_operand.vmem [shape: f32[2,1,32], index: 10, kind: input, shape index: {}]
  %s11 = inlined_call_operand.vmem [shape: f32[2,1,32], index: 11, kind: input, shape index: {}]
  %s12 = inlined_call_operand.vmem [shape: f32[2,1,32], index: 12, kind: input, shape index: {}]
  %s13 = inlined_call_operand.hbm [shape: bf16[2,8,32], index: 13, kind: output, shape index: {}]
  %s14 = sld [smem:[#allocation0]]
  $region89: #{tpu_custom_call.1} parent=0
    _
  %s16 = ssub.s32 1, %s14
  %s17 = scalar_select 0, %s16, %s14
  $region1: #{tpu_custom_call.1} parent=0
    #allocation3 [shape = 'u8[4096]{0}', space=vmem, size = 0x1000, scoped, tag = 'output window, operand 0']
    #allocation4 [shape = 's32[2]{0}', space=sflag, size = 0x8, scoped, tag = 'scoped memory for tpu_custom_call.1']
    %18 = vsyncpa [#allocation4], 0
    %s19 = scalar_lea.sflag [#allocation4], 1
    %20 = vsyncpa %s19, 0
    loop: start=0, step=1, limit=6
    $region2: #{tpu_custom_call.1} parent=1 // loop_pre_header
      _
    $region3: #{tpu_custom_call.1} parent=1 // loop_header
      %s22 = sphi 0, %s26
      %p23 = scmp.ge.s32.totalorder %s22, 6
      %s29 = sphi 0, %s41
      %s30 = sphi 0, %s37
      %s31 = sphi 0, %s29
      %s32 = sphi 0, %s30
      %s33 = sphi 0, %s31
      %s34 = sphi 0, %s32
      %s44 = sphi 0, %s46
      %s47 = sphi 0, %s44
      %s48 = sphi 0, %s47
      %s64 = sphi 0, %s48
      %s70 = sphi 0, %s72
      %s73 = sphi 0, %s70
      %s74 = sphi 0, %s73
      %s90 = sphi 0, %s74
      %s96 = sphi 0, %s98
      %s99 = sphi 0, %s96
      %s100 = sphi 0, %s99
      %s116 = sphi 0, %s100
      %s122 = sphi 0, %s124
      %s125 = sphi 0, %s122
      %s126 = sphi 0, %s125
      %s142 = sphi 0, %s126
      %s148 = sphi 0, %s150
      %s151 = sphi 0, %s148
      %s152 = sphi 0, %s151
      %s168 = sphi 0, %s152
      %s174 = sphi 0, %s176
      %s177 = sphi 0, %s174
      %s178 = sphi 0, %s177
      %s194 = sphi 0, %s178
      %s200 = sphi 0, %s202
      %s203 = sphi 0, %s200
      %s204 = sphi 0, %s203
      %s220 = sphi 0, %s204
      %s226 = sphi 0, %s228
      %s229 = sphi 0, %s226
      %s230 = sphi 0, %s229
      %s246 = sphi 0, %s230
      %s252 = sphi 0, %s254
      %s255 = sphi 0, %s252
      %s256 = sphi 0, %s255
      %s272 = sphi 0, %s256
      %s278 = sphi 0, %s280
      %s281 = sphi 0, %s278
      %s282 = sphi 0, %s281
      %s298 = sphi 0, %s282
      %s304 = sphi 0, %s306
      %s307 = sphi 0, %s304
      %s308 = sphi 0, %s307
      %s324 = sphi 0, %s308
      %s330 = sphi 0, %s332
      %s333 = sphi 0, %s330
      %s334 = sphi 0, %s333
      %s350 = sphi 0, %s334
      %s356 = sphi 0, %s358
      %s359 = sphi 0, %s356
      %s360 = sphi 0, %s359
      %s376 = sphi 0, %s360
      %s382 = sphi 0, %s384
      %s385 = sphi 0, %s382
      %s386 = sphi 0, %s385
      %s402 = sphi 0, %s386
    $region4: #{tpu_custom_call.1} parent=1 // loop_header_branch
      %25 = sbr.rel (%p23) target = $region8
    $region5: #{tpu_custom_call.1} parent=1 // loop_body
      %s27 = ssub.s32 %s22, 1
      %s28 = ssub.s32 %s22, 2
      %s35 = sadd.s32 1, %s30
      %p36 = scmp.ge.s32.totalorder %s35, 2
      %s37 = scalar_select %p36, 0, %s35
      %s38 = sadd.s32 1, %s29
      %s39 = scalar_select %p36, %s38, %s29
      %p40 = scmp.ge.s32.totalorder %s39, 2
      %s41 = scalar_select %p40, 0, %s39
      %s42 = ssub.s32 %s29, %s41
      %p43 = scmp.eq.s32.totalorder %s42, 0
      %s45 = sadd.s32 %s44, 1
      %s46 = scalar_select %p43, %s44, %s45
      %p49 = pneg %p43
      %p50 = scmp.eq.s32.totalorder %s22, 3
      %p51 = por %p49, %p50
      %p52 = scmp.ne.s32.totalorder %s44, %s47
      %p53 = scmp.eq.s32.totalorder %s22, 0
      %p54 = por %p52, %p53
      %p55 = scmp.ne.s32.totalorder %s44, %s47
      %p56 = scmp.eq.s32.totalorder %s27, 3
      %p57 = por %p55, %p56
      %p58 = scmp.ne.s32.totalorder %s47, %s48
      %p59 = scmp.eq.s32.totalorder %s27, 0
      %p60 = por %p58, %p59
      %p61 = scmp.ne.s32.totalorder %s47, %s48
      %p62 = scmp.eq.s32.totalorder %s28, 3
      %p63 = por %p61, %p62
      %p65 = scmp.ne.s32.totalorder %s48, %s64
      %p66 = scmp.eq.s32.totalorder %s28, 0
      %p67 = por %p65, %p66
      %s68 = ssub.s32 %s30, %s37
      %p69 = scmp.eq.s32.totalorder %s68, 0
      %s71 = sadd.s32 %s70, 1
      %s72 = scalar_select %p69, %s70, %s71
      %p75 = pneg %p69
      %p76 = scmp.eq.s32.totalorder %s22, 3
      %p77 = por %p75, %p76
      %p78 = scmp.ne.s32.totalorder %s70, %s73
      %p79 = scmp.eq.s32.totalorder %s22, 0
      %p80 = por %p78, %p79
      %p81 = scmp.ne.s32.totalorder %s70, %s73
      %p82 = scmp.eq.s32.totalorder %s27, 3
      %p83 = por %p81, %p82
      %p84 = scmp.ne.s32.totalorder %s73, %s74
      %p85 = scmp.eq.s32.totalorder %s27, 0
      %p86 = por %p84, %p85
      %p87 = scmp.ne.s32.totalorder %s73, %s74
      %p88 = scmp.eq.s32.totalorder %s28, 3
      %p89 = por %p87, %p88
      %p91 = scmp.ne.s32.totalorder %s74, %s90
      %p92 = scmp.eq.s32.totalorder %s28, 0
      %p93 = por %p91, %p92
      %s94 = ssub.s32 %s30, %s37
      %p95 = scmp.eq.s32.totalorder %s94, 0
      %s97 = sadd.s32 %s96, 1
      %s98 = scalar_select %p95, %s96, %s97
      %p101 = pneg %p95
      %p102 = scmp.eq.s32.totalorder %s22, 3
      %p103 = por %p101, %p102
      %p104 = scmp.ne.s32.totalorder %s96, %s99
      %p105 = scmp.eq.s32.totalorder %s22, 0
      %p106 = por %p104, %p105
      %p107 = scmp.ne.s32.totalorder %s96, %s99
      %p108 = scmp.eq.s32.totalorder %s27, 3
      %p109 = por %p107, %p108
      %p110 = scmp.ne.s32.totalorder %s99, %s100
      %p111 = scmp.eq.s32.totalorder %s27, 0
      %p112 = por %p110, %p111
      %p113 = scmp.ne.s32.totalorder %s99, %s100
      %p114 = scmp.eq.s32.totalorder %s28, 3
      %p115 = por %p113, %p114
      %p117 = scmp.ne.s32.totalorder %s100, %s116
      %p118 = scmp.eq.s32.totalorder %s28, 0
      %p119 = por %p117, %p118
      %s120 = ssub.s32 %s30, %s37
      %p121 = scmp.eq.s32.totalorder %s120, 0
      %s123 = sadd.s32 %s122, 1
      %s124 = scalar_select %p121, %s122, %s123
      %p127 = pneg %p121
      %p128 = scmp.eq.s32.totalorder %s22, 3
      %p129 = por %p127, %p128
      %p130 = scmp.ne.s32.totalorder %s122, %s125
      %p131 = scmp.eq.s32.totalorder %s22, 0
      %p132 = por %p130, %p131
      %p133 = scmp.ne.s32.totalorder %s122, %s125
      %p134 = scmp.eq.s32.totalorder %s27, 3
      %p135 = por %p133, %p134
      %p136 = scmp.ne.s32.totalorder %s125, %s126
      %p137 = scmp.eq.s32.totalorder %s27, 0
      %p138 = por %p136, %p137
      %p139 = scmp.ne.s32.totalorder %s125, %s126
      %p140 = scmp.eq.s32.totalorder %s28, 3
      %p141 = por %p139, %p140
      %p143 = scmp.ne.s32.totalorder %s126, %s142
      %p144 = scmp.eq.s32.totalorder %s28, 0
      %p145 = por %p143, %p144
      %s146 = ssub.s32 %s30, %s37
      %p147 = scmp.eq.s32.totalorder %s146, 0
      %s149 = sadd.s32 %s148, 1
      %s150 = scalar_select %p147, %s148, %s149
      %p153 = pneg %p147
      %p154 = scmp.eq.s32.totalorder %s22, 3
      %p155 = por %p153, %p154
      %p156 = scmp.ne.s32.totalorder %s148, %s151
      %p157 = scmp.eq.s32.totalorder %s22, 0
      %p158 = por %p156, %p157
      %p159 = scmp.ne.s32.totalorder %s148, %s151
      %p160 = scmp.eq.s32.totalorder %s27, 3
      %p161 = por %p159, %p160
      %p162 = scmp.ne.s32.totalorder %s151, %s152
      %p163 = scmp.eq.s32.totalorder %s27, 0
      %p164 = por %p162, %p163
      %p165 = scmp.ne.s32.totalorder %s151, %s152
      %p166 = scmp.eq.s32.totalorder %s28, 3
      %p167 = por %p165, %p166
      %p169 = scmp.ne.s32.totalorder %s152, %s168
      %p170 = scmp.eq.s32.totalorder %s28, 0
      %p171 = por %p169, %p170
      %s172 = ssub.s32 %s30, %s37
      %p173 = scmp.eq.s32.totalorder %s172, 0
      %s175 = sadd.s32 %s174, 1
      %s176 = scalar_select %p173, %s174, %s175
      %p179 = pneg %p173
      %p180 = scmp.eq.s32.totalorder %s22, 3
      %p181 = por %p179, %p180
      %p182 = scmp.ne.s32.totalorder %s174, %s177
      %p183 = scmp.eq.s32.totalorder %s22, 0
      %p184 = por %p182, %p183
      %p185 = scmp.ne.s32.totalorder %s174, %s177
      %p186 = scmp.eq.s32.totalorder %s27, 3
      %p187 = por %p185, %p186
      %p188 = scmp.ne.s32.totalorder %s177, %s178
      %p189 = scmp.eq.s32.totalorder %s27, 0
      %p190 = por %p188, %p189
      %p191 = scmp.ne.s32.totalorder %s177, %s178
      %p192 = scmp.eq.s32.totalorder %s28, 3
      %p193 = por %p191, %p192
      %p195 = scmp.ne.s32.totalorder %s178, %s194
      %p196 = scmp.eq.s32.totalorder %s28, 0
      %p197 = por %p195, %p196
      %s198 = ssub.s32 %s30, %s37
      %p199 = scmp.eq.s32.totalorder %s198, 0
      %s201 = sadd.s32 %s200, 1
      %s202 = scalar_select %p199, %s200, %s201
      %p205 = pneg %p199
      %p206 = scmp.eq.s32.totalorder %s22, 3
      %p207 = por %p205, %p206
      %p208 = scmp.ne.s32.totalorder %s200, %s203
      %p209 = scmp.eq.s32.totalorder %s22, 0
      %p210 = por %p208, %p209
      %p211 = scmp.ne.s32.totalorder %s200, %s203
      %p212 = scmp.eq.s32.totalorder %s27, 3
      %p213 = por %p211, %p212
      %p214 = scmp.ne.s32.totalorder %s203, %s204
      %p215 = scmp.eq.s32.totalorder %s27, 0
      %p216 = por %p214, %p215
      %p217 = scmp.ne.s32.totalorder %s203, %s204
      %p218 = scmp.eq.s32.totalorder %s28, 3
      %p219 = por %p217, %p218
      %p221 = scmp.ne.s32.totalorder %s204, %s220
      %p222 = scmp.eq.s32.totalorder %s28, 0
      %p223 = por %p221, %p222
      %s224 = ssub.s32 %s30, %s37
      %p225 = scmp.eq.s32.totalorder %s224, 0
      %s227 = sadd.s32 %s226, 1
      %s228 = scalar_select %p225, %s226, %s227
      %p231 = pneg %p225
      %p232 = scmp.eq.s32.totalorder %s22, 3
      %p233 = por %p231, %p232
      %p234 = scmp.ne.s32.totalorder %s226, %s229
      %p235 = scmp.eq.s32.totalorder %s22, 0
      %p236 = por %p234, %p235
      %p237 = scmp.ne.s32.totalorder %s226, %s229
      %p238 = scmp.eq.s32.totalorder %s27, 3
      %p239 = por %p237, %p238
      %p240 = scmp.ne.s32.totalorder %s229, %s230
      %p241 = scmp.eq.s32.totalorder %s27, 0
      %p242 = por %p240, %p241
      %p243 = scmp.ne.s32.totalorder %s229, %s230
      %p244 = scmp.eq.s32.totalorder %s28, 3
      %p245 = por %p243, %p244
      %p247 = scmp.ne.s32.totalorder %s230, %s246
      %p248 = scmp.eq.s32.totalorder %s28, 0
      %p249 = por %p247, %p248
      %s250 = ssub.s32 %s30, %s37
      %p251 = scmp.eq.s32.totalorder %s250, 0
      %s253 = sadd.s32 %s252, 1
      %s254 = scalar_select %p251, %s252, %s253
      %p257 = pneg %p251
      %p258 = scmp.eq.s32.totalorder %s22, 3
      %p259 = por %p257, %p258
      %p260 = scmp.ne.s32.totalorder %s252, %s255
      %p261 = scmp.eq.s32.totalorder %s22, 0
      %p262 = por %p260, %p261
      %p263 = scmp.ne.s32.totalorder %s252, %s255
      %p264 = scmp.eq.s32.totalorder %s27, 3
      %p265 = por %p263, %p264
      %p266 = scmp.ne.s32.totalorder %s255, %s256
      %p267 = scmp.eq.s32.totalorder %s27, 0
      %p268 = por %p266, %p267
      %p269 = scmp.ne.s32.totalorder %s255, %s256
      %p270 = scmp.eq.s32.totalorder %s28, 3
      %p271 = por %p269, %p270
      %p273 = scmp.ne.s32.totalorder %s256, %s272
      %p274 = scmp.eq.s32.totalorder %s28, 0
      %p275 = por %p273, %p274
      %s276 = ssub.s32 %s30, %s37
      %p277 = scmp.eq.s32.totalorder %s276, 0
      %s279 = sadd.s32 %s278, 1
      %s280 = scalar_select %p277, %s278, %s279
      %p283 = pneg %p277
      %p284 = scmp.eq.s32.totalorder %s22, 3
      %p285 = por %p283, %p284
      %p286 = scmp.ne.s32.totalorder %s278, %s281
      %p287 = scmp.eq.s32.totalorder %s22, 0
      %p288 = por %p286, %p287
      %p289 = scmp.ne.s32.totalorder %s278, %s281
      %p290 = scmp.eq.s32.totalorder %s27, 3
      %p291 = por %p289, %p290
      %p292 = scmp.ne.s32.totalorder %s281, %s282
      %p293 = scmp.eq.s32.totalorder %s27, 0
      %p294 = por %p292, %p293
      %p295 = scmp.ne.s32.totalorder %s281, %s282
      %p296 = scmp.eq.s32.totalorder %s28, 3
      %p297 = por %p295, %p296
      %p299 = scmp.ne.s32.totalorder %s282, %s298
      %p300 = scmp.eq.s32.totalorder %s28, 0
      %p301 = por %p299, %p300
      %s302 = ssub.s32 %s30, %s37
      %p303 = scmp.eq.s32.totalorder %s302, 0
      %s305 = sadd.s32 %s304, 1
      %s306 = scalar_select %p303, %s304, %s305
      %p309 = pneg %p303
      %p310 = scmp.eq.s32.totalorder %s22, 3
      %p311 = por %p309, %p310
      %p312 = scmp.ne.s32.totalorder %s304, %s307
      %p313 = scmp.eq.s32.totalorder %s22, 0
      %p314 = por %p312, %p313
      %p315 = scmp.ne.s32.totalorder %s304, %s307
      %p316 = scmp.eq.s32.totalorder %s27, 3
      %p317 = por %p315, %p316
      %p318 = scmp.ne.s32.totalorder %s307, %s308
      %p319 = scmp.eq.s32.totalorder %s27, 0
      %p320 = por %p318, %p319
      %p321 = scmp.ne.s32.totalorder %s307, %s308
      %p322 = scmp.eq.s32.totalorder %s28, 3
      %p323 = por %p321, %p322
      %p325 = scmp.ne.s32.totalorder %s308, %s324
      %p326 = scmp.eq.s32.totalorder %s28, 0
      %p327 = por %p325, %p326
      %s328 = ssub.s32 %s30, %s37
      %p329 = scmp.eq.s32.totalorder %s328, 0
      %s331 = sadd.s32 %s330, 1
      %s332 = scalar_select %p329, %s330, %s331
      %p335 = pneg %p329
      %p336 = scmp.eq.s32.totalorder %s22, 3
      %p337 = por %p335, %p336
      %p338 = scmp.ne.s32.totalorder %s330, %s333
      %p339 = scmp.eq.s32.totalorder %s22, 0
      %p340 = por %p338, %p339
      %p341 = scmp.ne.s32.totalorder %s330, %s333
      %p342 = scmp.eq.s32.totalorder %s27, 3
      %p343 = por %p341, %p342
      %p344 = scmp.ne.s32.totalorder %s333, %s334
      %p345 = scmp.eq.s32.totalorder %s27, 0
      %p346 = por %p344, %p345
      %p347 = scmp.ne.s32.totalorder %s333, %s334
      %p348 = scmp.eq.s32.totalorder %s28, 3
      %p349 = por %p347, %p348
      %p351 = scmp.ne.s32.totalorder %s334, %s350
      %p352 = scmp.eq.s32.totalorder %s28, 0
      %p353 = por %p351, %p352
      %s354 = ssub.s32 %s30, %s37
      %p355 = scmp.eq.s32.totalorder %s354, 0
      %s357 = sadd.s32 %s356, 1
      %s358 = scalar_select %p355, %s356, %s357
      %p361 = pneg %p355
      %p362 = scmp.eq.s32.totalorder %s22, 3
      %p363 = por %p361, %p362
      %p364 = scmp.ne.s32.totalorder %s356, %s359
      %p365 = scmp.eq.s32.totalorder %s22, 0
      %p366 = por %p364, %p365
      %p367 = scmp.ne.s32.totalorder %s356, %s359
      %p368 = scmp.eq.s32.totalorder %s27, 3
      %p369 = por %p367, %p368
      %p370 = scmp.ne.s32.totalorder %s359, %s360
      %p371 = scmp.eq.s32.totalorder %s27, 0
      %p372 = por %p370, %p371
      %p373 = scmp.ne.s32.totalorder %s359, %s360
      %p374 = scmp.eq.s32.totalorder %s28, 3
      %p375 = por %p373, %p374
      %p377 = scmp.ne.s32.totalorder %s360, %s376
      %p378 = scmp.eq.s32.totalorder %s28, 0
      %p379 = por %p377, %p378
      %s380 = ssub.s32 %s29, %s41
      %p381 = scmp.eq.s32.totalorder %s380, 0
      %s383 = sadd.s32 %s382, 1
      %s384 = scalar_select %p381, %s382, %s383
      %p387 = pneg %p381
      %p388 = scmp.eq.s32.totalorder %s22, 3
      %p389 = por %p387, %p388
      %p390 = scmp.ne.s32.totalorder %s382, %s385
      %p391 = scmp.eq.s32.totalorder %s22, 0
      %p392 = por %p390, %p391
      %p393 = scmp.ne.s32.totalorder %s382, %s385
      %p394 = scmp.eq.s32.totalorder %s27, 3
      %p395 = por %p393, %p394
      %p396 = scmp.ne.s32.totalorder %s385, %s386
      %p397 = scmp.eq.s32.totalorder %s27, 0
      %p398 = por %p396, %p397
      %p399 = scmp.ne.s32.totalorder %s385, %s386
      %p400 = scmp.eq.s32.totalorder %s28, 3
      %p401 = por %p399, %p400
      %p403 = scmp.ne.s32.totalorder %s386, %s402
      %p404 = scmp.eq.s32.totalorder %s28, 0
      %p405 = por %p403, %p404
      %p406 = scmp.le.s32.totalorder 1, %s22
      %p407 = scmp.lt.s32.totalorder %s22, 5
      %p408 = pnand %p406, %p407
      %p409 = pneg %p408
      // Predicated region
      $region9: #{tpu_custom_call.1} parent=5 // pred_check
        _
      $region10: #{tpu_custom_call.1} parent=5 // pred_check_branch
        %411 = sbr.rel (%p408) target = $region12
      $region11: #{tpu_custom_call.1} parent=5 // pred_region
        %s412 = ssub.s32 %s22, 1
      $region12: #{tpu_custom_call.1} parent=5 // pred_fallthru
        _
      %p413 = scmp.lt.s32.totalorder %s22, 4
      // Predicated region
      $region13: #{tpu_custom_call.1} parent=5 // pred_check
        %p414 = pneg %p413
      $region14: #{tpu_custom_call.1} parent=5 // pred_check_branch
        %416 = sbr.rel (%p414) target = $region16
      $region15: #{tpu_custom_call.1} parent=5 // pred_region
        // Predicated region
        $region17: #{tpu_custom_call.1} parent=15 // pred_check
          %p417 = pneg %p54
        $region18: #{tpu_custom_call.1} parent=15 // pred_check_branch
          %419 = sbr.rel (%p417) target = $region20
        $region19: #{tpu_custom_call.1} parent=15 // pred_region
          %p420 = scmp.lt.s32.totalorder %s29, 1
          %s421 = scalar_select %p420, %s29, 1
          %s422 = smul.addr %s421, 4
          %s423 = scalar_lea.vmem %s0, %s422
        $region20: #{tpu_custom_call.1} parent=15 // pred_fallthru
          _
        // Predicated region
        $region21: #{tpu_custom_call.1} parent=15 // pred_check
          %p424 = pneg %p80
        $region22: #{tpu_custom_call.1} parent=15 // pred_check_branch
          %426 = sbr.rel (%p424) target = $region24
        $region23: #{tpu_custom_call.1} parent=15 // pred_region
          %p427 = scmp.lt.s32.totalorder %s30, 1
          %s428 = scalar_select %p427, %s30, 1
          %s429 = smul.addr %s428, 4
          %s430 = smul.addr %s429, 4
          %s431 = scalar_lea.vmem %s1, %s430
        $region24: #{tpu_custom_call.1} parent=15 // pred_fallthru
          _
        // Predicated region
        $region25: #{tpu_custom_call.1} parent=15 // pred_check
          %p432 = pneg %p106
        $region26: #{tpu_custom_call.1} parent=15 // pred_check_branch
          %434 = sbr.rel (%p432) target = $region28
        $region27: #{tpu_custom_call.1} parent=15 // pred_region
          %p435 = scmp.lt.s32.totalorder %s30, 1
          %s436 = scalar_select %p435, %s30, 1
          %s437 = scalar_lea.vmem %s2, %s436
        $region28: #{tpu_custom_call.1} parent=15 // pred_fallthru
          _
        // Predicated region
        $region29: #{tpu_custom_call.1} parent=15 // pred_check
          %p438 = pneg %p132
        $region30: #{tpu_custom_call.1} parent=15 // pred_check_branch
          %440 = sbr.rel (%p438) target = $region32
        $region31: #{tpu_custom_call.1} parent=15 // pred_region
          %p441 = scmp.lt.s32.totalorder %s30, 1
          %s442 = scalar_select %p441, %s30, 1
          %s443 = smul.addr %s442, 4
          %s444 = smul.addr %s443, 4
          %s445 = scalar_lea.vmem %s3, %s444
        $region32: #{tpu_custom_call.1} parent=15 // pred_fallthru
          _
        // Predicated region
        $region33: #{tpu_custom_call.1} parent=15 // pred_check
          %p446 = pneg %p158
        $region34: #{tpu_custom_call.1} parent=15 // pred_check_branch
          %448 = sbr.rel (%p446) target = $region36
        $region35: #{tpu_custom_call.1} parent=15 // pred_region
          %p449 = scmp.lt.s32.totalorder %s30, 1
          %s450 = scalar_select %p449, %s30, 1
          %s451 = scalar_lea.vmem %s4, %s450
        $region36: #{tpu_custom_call.1} parent=15 // pred_fallthru
          _
        // Predicated region
        $region37: #{tpu_custom_call.1} parent=15 // pred_check
          %p452 = pneg %p184
        $region38: #{tpu_custom_call.1} parent=15 // pred_check_branch
          %454 = sbr.rel (%p452) target = $region40
        $region39: #{tpu_custom_call.1} parent=15 // pred_region
          %p455 = scmp.lt.s32.totalorder %s30, 1
          %s456 = scalar_select %p455, %s30, 1
          %s457 = scalar_lea.vmem %s5, %s456
        $region40: #{tpu_custom_call.1} parent=15 // pred_fallthru
          _
        // Predicated region
        $region41: #{tpu_custom_call.1} parent=15 // pred_check
          %p458 = pneg %p210
        $region42: #{tpu_custom_call.1} parent=15 // pred_check_branch
          %460 = sbr.rel (%p458) target = $region44
        $region43: #{tpu_custom_call.1} parent=15 // pred_region
          %p461 = scmp.lt.s32.totalorder %s30, 1
          %s462 = scalar_select %p461, %s30, 1
          %s463 = scalar_lea.vmem %s6, %s462
        $region44: #{tpu_custom_call.1} parent=15 // pred_fallthru
          _
        // Predicated region
        $region45: #{tpu_custom_call.1} parent=15 // pred_check
          %p464 = pneg %p236
        $region46: #{tpu_custom_call.1} parent=15 // pred_check_branch
          %466 = sbr.rel (%p464) target = $region48
        $region47: #{tpu_custom_call.1} parent=15 // pred_region
          %p467 = scmp.lt.s32.totalorder %s30, 1
          %s468 = scalar_select %p467, %s30, 1
          %s469 = smul.addr %s468, 4
          %s470 = smul.addr %s469, 4
          %s471 = scalar_lea.vmem %s7, %s470
        $region48: #{tpu_custom_call.1} parent=15 // pred_fallthru
          _
        // Predicated region
        $region49: #{tpu_custom_call.1} parent=15 // pred_check
          %p472 = pneg %p262
        $region50: #{tpu_custom_call.1} parent=15 // pred_check_branch
          %474 = sbr.rel (%p472) target = $region52
        $region51: #{tpu_custom_call.1} parent=15 // pred_region
          %p475 = scmp.lt.s32.totalorder %s30, 1
          %s476 = scalar_select %p475, %s30, 1
          %s477 = scalar_lea.vmem %s8, %s476
        $region52: #{tpu_custom_call.1} parent=15 // pred_fallthru
          _
        // Predicated region
        $region53: #{tpu_custom_call.1} parent=15 // pred_check
          %p478 = pneg %p288
        $region54: #{tpu_custom_call.1} parent=15 // pred_check_branch
          %480 = sbr.rel (%p478) target = $region56
        $region55: #{tpu_custom_call.1} parent=15 // pred_region
          %p481 = scmp.lt.s32.totalorder %s30, 1
          %s482 = scalar_select %p481, %s30, 1
          %s483 = smul.addr %s482, 16
          %s484 = smul.addr %s483, 4
          %s485 = scalar_lea.vmem %s9, %s484
        $region56: #{tpu_custom_call.1} parent=15 // pred_fallthru
          _
        // Predicated region
        $region57: #{tpu_custom_call.1} parent=15 // pred_check
          %p486 = pneg %p314
        $region58: #{tpu_custom_call.1} parent=15 // pred_check_branch
          %488 = sbr.rel (%p486) target = $region60
        $region59: #{tpu_custom_call.1} parent=15 // pred_region
          %p489 = scmp.lt.s32.totalorder %s30, 1
          %s490 = scalar_select %p489, %s30, 1
          %s491 = scalar_lea.vmem %s10, %s490
        $region60: #{tpu_custom_call.1} parent=15 // pred_fallthru
          _
        // Predicated region
        $region61: #{tpu_custom_call.1} parent=15 // pred_check
          %p492 = pneg %p340
        $region62: #{tpu_custom_call.1} parent=15 // pred_check_branch
          %494 = sbr.rel (%p492) target = $region64
        $region63: #{tpu_custom_call.1} parent=15 // pred_region
          %p495 = scmp.lt.s32.totalorder %s30, 1
          %s496 = scalar_select %p495, %s30, 1
          %s497 = scalar_lea.vmem %s11, %s496
        $region64: #{tpu_custom_call.1} parent=15 // pred_fallthru
          _
        // Predicated region
        $region65: #{tpu_custom_call.1} parent=15 // pred_check
          %p498 = pneg %p366
        $region66: #{tpu_custom_call.1} parent=15 // pred_check_branch
          %500 = sbr.rel (%p498) target = $region68
        $region67: #{tpu_custom_call.1} parent=15 // pred_region
          %p501 = scmp.lt.s32.totalorder %s30, 1
          %s502 = scalar_select %p501, %s30, 1
          %s503 = scalar_lea.vmem %s12, %s502
        $region68: #{tpu_custom_call.1} parent=15 // pred_fallthru
          _
      $region16: #{tpu_custom_call.1} parent=5 // pred_fallthru
        _
      %p504 = scmp.le.s32.totalorder 1, %s22
      %p505 = scmp.lt.s32.totalorder %s22, 5
      %p506 = pnand %p504, %p505
      %p507 = pneg %p506
      // Predicated region
      $region69: #{tpu_custom_call.1} parent=5 // pred_check
        _
      $region70: #{tpu_custom_call.1} parent=5 // pred_check_branch
        %509 = sbr.rel (%p506) target = $region72
      $region71: #{tpu_custom_call.1} parent=5 // pred_region
        %s510 = ssub.s32 %s22, 1
        %p511 = scmp.lt.s32.totalorder %s31, 1
        %s512 = scalar_select %p511, %s31, 1
        %s513 = smul.addr %s512, 4
        %s514 = scalar_lea.vmem %s0, %s513
        %p515 = pneg %p60
        %p516 = pneg %p57
        %p517 = scmp.lt.s32.totalorder %s32, 1
        %s518 = scalar_select %p517, %s32, 1
        %s519 = smul.addr %s518, 4
        %s520 = smul.addr %s519, 4
        %s521 = scalar_lea.vmem %s1, %s520
        %p522 = pneg %p86
        %p523 = pneg %p83
        %p524 = scmp.lt.s32.totalorder %s32, 1
        %s525 = scalar_select %p524, %s32, 1
        %s526 = scalar_lea.vmem %s2, %s525
        %p527 = pneg %p112
        %p528 = pneg %p109
        %p529 = scmp.lt.s32.totalorder %s32, 1
        %s530 = scalar_select %p529, %s32, 1
        %s531 = smul.addr %s530, 4
        %s532 = smul.addr %s531, 4
        %s533 = scalar_lea.vmem %s3, %s532
        %p534 = pneg %p138
        %p535 = pneg %p135
        %p536 = scmp.lt.s32.totalorder %s32, 1
        %s537 = scalar_select %p536, %s32, 1
        %s538 = scalar_lea.vmem %s4, %s537
        %p539 = pneg %p164
        %p540 = pneg %p161
        %p541 = scmp.lt.s32.totalorder %s32, 1
        %s542 = scalar_select %p541, %s32, 1
        %s543 = scalar_lea.vmem %s5, %s542
        %p544 = pneg %p190
        %p545 = pneg %p187
        %p546 = scmp.lt.s32.totalorder %s32, 1
        %s547 = scalar_select %p546, %s32, 1
        %s548 = scalar_lea.vmem %s6, %s547
        %p549 = pneg %p216
        %p550 = pneg %p213
        %p551 = scmp.lt.s32.totalorder %s32, 1
        %s552 = scalar_select %p551, %s32, 1
        %s553 = smul.addr %s552, 4
        %s554 = smul.addr %s553, 4
        %s555 = scalar_lea.vmem %s7, %s554
        %p556 = pneg %p242
        %p557 = pneg %p239
        %p558 = scmp.lt.s32.totalorder %s32, 1
        %s559 = scalar_select %p558, %s32, 1
        %s560 = scalar_lea.vmem %s8, %s559
        %p561 = pneg %p268
        %p562 = pneg %p265
        %p563 = scmp.lt.s32.totalorder %s32, 1
        %s564 = scalar_select %p563, %s32, 1
        %s565 = smul.addr %s564, 16
        %s566 = smul.addr %s565, 4
        %s567 = scalar_lea.vmem %s9, %s566
        %p568 = pneg %p294
        %p569 = pneg %p291
        %p570 = scmp.lt.s32.totalorder %s32, 1
        %s571 = scalar_select %p570, %s32, 1
        %s572 = scalar_lea.vmem %s10, %s571
        %p573 = pneg %p320
        %p574 = pneg %p317
        %p575 = scmp.lt.s32.totalorder %s32, 1
        %s576 = scalar_select %p575, %s32, 1
        %s577 = scalar_lea.vmem %s11, %s576
        %p578 = pneg %p346
        %p579 = pneg %p343
        %p580 = scmp.lt.s32.totalorder %s32, 1
        %s581 = scalar_select %p580, %s32, 1
        %s582 = scalar_lea.vmem %s12, %s581
        %p583 = pneg %p372
        %p584 = pneg %p369
        %p585 = pneg %p398
        %p586 = pneg %p395
        %s587 = sand.u32 %s385, 1
        %s588 = scalar_lea.sflag [#allocation4], %s587
        %s589 = sand.u32 %s385, 1
        %s590 = smul.addr %s589, 4
        %s591 = scalar_lea.vmem [#allocation3], %s590
        %p592 = scmp.lt.s32.totalorder %s31, 1
        %s593 = scalar_select %p592, %s31, 1
        %s594 = smul.addr %s593, 4
        %s595 = scalar_lea.vmem %s0, %s594
        %p596 = scmp.lt.s32.totalorder %s32, 1
        %s597 = scalar_select %p596, %s32, 1
        %s598 = smul.addr %s597, 4
        %s599 = smul.addr %s598, 4
        %s600 = scalar_lea.vmem %s1, %s599
        %p601 = scmp.lt.s32.totalorder %s32, 1
        %s602 = scalar_select %p601, %s32, 1
        %s603 = scalar_lea.vmem %s2, %s602
        %p604 = scmp.lt.s32.totalorder %s32, 1
        %s605 = scalar_select %p604, %s32, 1
        %s606 = smul.addr %s605, 4
        %s607 = smul.addr %s606, 4
        %s608 = scalar_lea.vmem %s3, %s607
        %p609 = scmp.lt.s32.totalorder %s32, 1
        %s610 = scalar_select %p609, %s32, 1
        %s611 = scalar_lea.vmem %s4, %s610
        %p612 = scmp.lt.s32.totalorder %s32, 1
        %s613 = scalar_select %p612, %s32, 1
        %s614 = scalar_lea.vmem %s5, %s613
        %p615 = scmp.lt.s32.totalorder %s32, 1
        %s616 = scalar_select %p615, %s32, 1
        %s617 = scalar_lea.vmem %s6, %s616
        %p618 = scmp.lt.s32.totalorder %s32, 1
        %s619 = scalar_select %p618, %s32, 1
        %s620 = smul.addr %s619, 4
        %s621 = smul.addr %s620, 4
        %s622 = scalar_lea.vmem %s7, %s621
        %p623 = scmp.lt.s32.totalorder %s32, 1
        %s624 = scalar_select %p623, %s32, 1
        %s625 = scalar_lea.vmem %s8, %s624
        %p626 = scmp.lt.s32.totalorder %s32, 1
        %s627 = scalar_select %p626, %s32, 1
        %s628 = smul.addr %s627, 16
        %s629 = smul.addr %s628, 4
        %s630 = scalar_lea.vmem %s9, %s629
        %p631 = scmp.lt.s32.totalorder %s32, 1
        %s632 = scalar_select %p631, %s32, 1
        %s633 = scalar_lea.vmem %s10, %s632
        %p634 = scmp.lt.s32.totalorder %s32, 1
        %s635 = scalar_select %p634, %s32, 1
        %s636 = scalar_lea.vmem %s11, %s635
        %p637 = scmp.lt.s32.totalorder %s32, 1
        %s638 = scalar_select %p637, %s32, 1
        %s639 = scalar_lea.vmem %s12, %s638
        %p641 = scmp.eq.s32.totalorder %s32, 0
        // Predicated region
        $region73: #{tpu_custom_call.1} parent=71 // pred_check
          %p642 = pneg %p641
        $region74: #{tpu_custom_call.1} parent=71 // pred_check_branch
          %644 = sbr.rel (%p642) target = $region76
        $region75: #{tpu_custom_call.1} parent=71 // pred_region
          %v645 = vld [vmem:[%s595] sm:$0xf]
          %vm646 = vcmask 257024
          %647 = vst.msk [vmem:[%s591] sm:$0xf] %vm646, %v645
        $region76: #{tpu_custom_call.1} parent=71 // pred_fallthru
          _
        %v648 = vld [vmem:[%s591] sm:$0xf]
        %v649 = vunpack.c.l.bf16 %v648
        %v650 = vld [vmem:[%s600] sm:$0xf]
        %v651 = vld [vmem:[%s600 + $0x4] sm:$0xf]
        %v652 = vld [vmem:[%s600 + $0x8] sm:$0xf]
        %v653 = vld [vmem:[%s600 + $0xc] sm:$0xf]
        %v654 = vld [vmem:[%s603] sm:$0x1]
        %v656 = vlaneseq
        %v657 = vshrl.u32 %v656, 7
        %v658 = vsub.s32 0, %v657
        %v659 = vrot.slane %v654, %v658
        %v665 = vunpack.c.l.b16 %v650
        %v666 = vunpack.c.l.b16 %v651
        %v667 = vunpack.c.l.b16 %v652
        %v668 = vunpack.c.l.b16 %v653
        %v669 = vpack.c.b16 %v666, %v665
        %v670 = vpack.c.b16 %v668, %v667
        %vm673 = vcmask 261120
        %v675 = vsel %vm673, %v648, 0
        %677 = vmatprep.subr.bf16.mxu0 0
        %678 = vmatpush1.bf16.msra.mxu0 0
        %679 = vmatprep.subr.bf16.mxu0 0
        %680 = vmatpush1.bf16.msra.mxu0 0
        %681 = vmatprep.subr.bf16.mxu0 0
        %682 = vmatpush1.bf16.msra.mxu0 0
        %683 = vmatprep.subr.bf16.mxu0 0
        %684 = vmatpush1.bf16.msra.mxu0 0
        %685 = vmatprep.subr.bf16.mxu0 0
        %686 = vmatpush1.bf16.msra.mxu0 0
        %687 = vmatprep.subr.bf16.mxu0 0
        %688 = vmatpush1.bf16.msra.mxu0 0
        %689 = vmatprep.subr.bf16.mxu0 0
        %690 = vmatpush1.bf16.msra.mxu0 %v670
        %691 = vmatprep.subr.bf16.mxu0 0
        %692 = vmatpush1.bf16.msra.mxu0 %v669
        %693 = vmatprep.subr.bf16.mxu0 0
        %694 = vmatpush2.bf16.msra.mxu0 0
        %695 = vmatprep.subr.bf16.mxu0 0
        %696 = vmatpush2.bf16.msra.mxu0 0
        %697 = vmatprep.subr.bf16.mxu0 0
        %698 = vmatpush2.bf16.msra.mxu0 0
        %699 = vmatprep.subr.bf16.mxu0 0
        %700 = vmatpush2.bf16.msra.mxu0 0
        %701 = vmatprep.subr.bf16.mxu0 0
        %702 = vmatpush2.bf16.msra.mxu0 0
        %703 = vmatprep.subr.bf16.mxu0 0
        %704 = vmatpush2.bf16.msra.mxu0 0
        %705 = vmatprep.subr.bf16.mxu0 0
        %706 = vmatpush2.bf16.msra.mxu0 0
        %707 = vmatprep.subr.bf16.mxu0 0
        %708 = vmatpush2.bf16.msra.mxu0 0
        %709 = vmatprep.mubr.bf16.mxu0 0
        %710 = vmatmul.mubr.bf16.gmra.mxu0 %v675
        %v711 = vpop.f32.mrf.mxu0
        %v712 = vadd.f32 %v659, %v711
        %v713 = vpop.f32.mrf.mxu0
        %v714 = vpop.f32.mrf.mxu0
        %v715 = vpop.f32.mrf.mxu0
        %716 = vdwg.mxu0
        %v717 = vlaneseq
        %v718 = vshrl.u32 %v717, 7
        %v719 = vlaneseq
        %v720 = vand.u32 %v719, 127
        %vm721 = vcmp.le.s32.totalorder %v720, %v718
        %v722 = vpack.c.bf16 %v712, %v712
        %724 = vrot.lane.b32.xlu0 %v722, 96
        %v725 = vpop.permute.xlu0 %724
        %vm726 = vcmask 64512
        %v728 = vsel %vm726, %v722, 0
        %v731 = vsel %vm726, %v725, 0
        %733 = vmatprep.subr.bf16.mxu0 0
        %734 = vmatpush1.bf16.xpose.msra.mxu0 0
        %735 = vmatprep.subr.bf16.mxu0 0
        %736 = vmatpush1.bf16.xpose.msra.mxu0 0
        %737 = vmatprep.subr.bf16.mxu0 0
        %738 = vmatpush1.bf16.xpose.msra.mxu0 0
        %739 = vmatprep.subr.bf16.mxu0 0
        %740 = vmatpush1.bf16.xpose.msra.mxu0 0
        %741 = vmatprep.subr.bf16.mxu0 0
        %742 = vmatpush1.bf16.xpose.msra.mxu0 0
        %743 = vmatprep.subr.bf16.mxu0 0
        %744 = vmatpush1.bf16.xpose.msra.mxu0 0
        %745 = vmatprep.subr.bf16.mxu0 0
        %746 = vmatpush1.bf16.xpose.msra.mxu0 0
        %747 = vmatprep.subr.bf16.mxu0 0
        %748 = vmatpush1.bf16.xpose.msra.mxu0 %v731
        %749 = vmatprep.subr.bf16.mxu0 0
        %750 = vmatpush2.bf16.xpose.msra.mxu0 0
        %751 = vmatprep.subr.bf16.mxu0 0
        %752 = vmatpush2.bf16.xpose.msra.mxu0 0
        %753 = vmatprep.subr.bf16.mxu0 0
        %754 = vmatpush2.bf16.xpose.msra.mxu0 0
        %755 = vmatprep.subr.bf16.mxu0 0
        %756 = vmatpush2.bf16.xpose.msra.mxu0 0
        %757 = vmatprep.subr.bf16.mxu0 0
        %758 = vmatpush2.bf16.xpose.msra.mxu0 0
        %759 = vmatprep.subr.bf16.mxu0 0
        %760 = vmatpush2.bf16.xpose.msra.mxu0 0
        %761 = vmatprep.subr.bf16.mxu0 0
        %762 = vmatpush2.bf16.xpose.msra.mxu0 0
        %763 = vmatprep.subr.bf16.mxu0 0
        %764 = vmatpush2.bf16.xpose.msra.mxu0 0
        %765 = vmatprep.mubr.bf16.mxu0 0
        %766 = vmatmul.mubr.bf16.gmra.mxu0 %v728
        %v767 = vpop.f32.mrf.mxu0
        %v768 = vadd.f32 0.0, %v767
        %v769 = vpop.f32.mrf.mxu0
        %v770 = vpop.f32.mrf.mxu0
        %v771 = vpop.f32.mrf.mxu0
        %772 = vdwg.mxu0
        %v773 = vmul.f32 %v768, 0.35355338
        %v774 = vsel %vm721, %v773, -1e+30
        %v775 = vsel %vm726, %v774, -inf
        %776 = vmax.xlane.f32.xlu0 %v775
        %v777 = vpop.xlane.xlu0 %776
        %v778 = vsub.f32 %v774, %v777
        %v779 = vmul.f32 %v778, 1.442695
        %v780 = vpow.pop %v779
        %v781 = vsel %vm726, %v780, 0.0
        %782 = vadd.xlane.f32.xlu0 %v781
        %v783 = vpop.xlane.xlu0 %782
        %v784 = vrcp.pop %v783
        %v785 = vmul.f32 %v780, %v784
        %v786 = vpack.c.bf16 %v785, %v785
        %787 = vrot.lane.b32.xlu0 %v722, 64
        %v788 = vpop.permute.xlu0 %787
        %v790 = vsel %vm726, %v786, 0
        %vm792 = vcmask 1043456
        %v794 = vsel %vm792, %v788, 0
        %796 = vmatprep.subr.bf16.mxu0 0
        %797 = vmatpush1.bf16.msra.mxu0 0
        %798 = vmatprep.subr.bf16.mxu0 0
        %799 = vmatpush1.bf16.msra.mxu0 0
        %800 = vmatprep.subr.bf16.mxu0 0
        %801 = vmatpush1.bf16.msra.mxu0 0
        %802 = vmatprep.subr.bf16.mxu0 0
        %803 = vmatpush1.bf16.msra.mxu0 0
        %804 = vmatprep.subr.bf16.mxu0 0
        %805 = vmatpush1.bf16.msra.mxu0 0
        %806 = vmatprep.subr.bf16.mxu0 0
        %807 = vmatpush1.bf16.msra.mxu0 0
        %808 = vmatprep.subr.bf16.mxu0 0
        %809 = vmatpush1.bf16.msra.mxu0 0
        %810 = vmatprep.subr.bf16.mxu0 0
        %811 = vmatpush1.bf16.msra.mxu0 %v794
        %812 = vmatprep.subr.bf16.mxu0 0
        %813 = vmatpush2.bf16.msra.mxu0 0
        %814 = vmatprep.subr.bf16.mxu0 0
        %815 = vmatpush2.bf16.msra.mxu0 0
        %816 = vmatprep.subr.bf16.mxu0 0
        %817 = vmatpush2.bf16.msra.mxu0 0
        %818 = vmatprep.subr.bf16.mxu0 0
        %819 = vmatpush2.bf16.msra.mxu0 0
        %820 = vmatprep.subr.bf16.mxu0 0
        %821 = vmatpush2.bf16.msra.mxu0 0
        %822 = vmatprep.subr.bf16.mxu0 0
        %823 = vmatpush2.bf16.msra.mxu0 0
        %824 = vmatprep.subr.bf16.mxu0 0
        %825 = vmatpush2.bf16.msra.mxu0 0
        %826 = vmatprep.subr.bf16.mxu0 0
        %827 = vmatpush2.bf16.msra.mxu0 0
        %828 = vmatprep.mubr.bf16.mxu0 0
        %829 = vmatmul.mubr.bf16.gmra.mxu0 %v790
        %v830 = vpop.f32.mrf.mxu0
        %v831 = vadd.f32 0.0, %v830
        %v832 = vpop.f32.mrf.mxu0
        %v833 = vpop.f32.mrf.mxu0
        %v834 = vpop.f32.mrf.mxu0
        %835 = vdwg.mxu0
        %v836 = vpack.c.bf16 %v831, %v831
        %vm837 = vcmask 60416
        %838 = vst.msk [vmem:[#allocation2] sm:$0xf] %vm837, %v836
        %839 = vrot.lane.b32.xlu0 %v722, 120
        %v840 = vpop.permute.xlu0 %839
        %841 = vrot.lane.b32.xlu0 %v722, 88
        %v842 = vpop.permute.xlu0 %841
        %v844 = vsel %vm726, %v840, 0
        %v847 = vsel %vm726, %v842, 0
        %849 = vmatprep.subr.bf16.mxu0 0
        %850 = vmatpush1.bf16.xpose.msra.mxu0 0
        %851 = vmatprep.subr.bf16.mxu0 0
        %852 = vmatpush1.bf16.xpose.msra.mxu0 0
        %853 = vmatprep.subr.bf16.mxu0 0
        %854 = vmatpush1.bf16.xpose.msra.mxu0 0
        %855 = vmatprep.subr.bf16.mxu0 0
        %856 = vmatpush1.bf16.xpose.msra.mxu0 0
        %857 = vmatprep.subr.bf16.mxu0 0
        %858 = vmatpush1.bf16.xpose.msra.mxu0 0
        %859 = vmatprep.subr.bf16.mxu0 0
        %860 = vmatpush1.bf16.xpose.msra.mxu0 0
        %861 = vmatprep.subr.bf16.mxu0 0
        %862 = vmatpush1.bf16.xpose.msra.mxu0 0
        %863 = vmatprep.subr.bf16.mxu0 0
        %864 = vmatpush1.bf16.xpose.msra.mxu0 %v847
        %865 = vmatprep.subr.bf16.mxu0 0
        %866 = vmatpush2.bf16.xpose.msra.mxu0 0
        %867 = vmatprep.subr.bf16.mxu0 0
        %868 = vmatpush2.bf16.xpose.msra.mxu0 0
        %869 = vmatprep.subr.bf16.mxu0 0
        %870 = vmatpush2.bf16.xpose.msra.mxu0 0
        %871 = vmatprep.subr.bf16.mxu0 0
        %872 = vmatpush2.bf16.xpose.msra.mxu0 0
        %873 = vmatprep.subr.bf16.mxu0 0
        %874 = vmatpush2.bf16.xpose.msra.mxu0 0
        %875 = vmatprep.subr.bf16.mxu0 0
        %876 = vmatpush2.bf16.xpose.msra.mxu0 0
        %877 = vmatprep.subr.bf16.mxu0 0
        %878 = vmatpush2.bf16.xpose.msra.mxu0 0
        %879 = vmatprep.subr.bf16.mxu0 0
        %880 = vmatpush2.bf16.xpose.msra.mxu0 0
        %881 = vmatprep.mubr.bf16.mxu0 0
        %882 = vmatmul.mubr.bf16.gmra.mxu0 %v844
        %v883 = vpop.f32.mrf.mxu0
        %v884 = vadd.f32 0.0, %v883
        %v885 = vpop.f32.mrf.mxu0
        %v886 = vpop.f32.mrf.mxu0
        %v887 = vpop.f32.mrf.mxu0
        %888 = vdwg.mxu0
        %v889 = vmul.f32 %v884, 0.35355338
        %v890 = vsel %vm721, %v889, -1e+30
        %v891 = vsel %vm726, %v890, -inf
        %892 = vmax.xlane.f32.xlu0 %v891
        %v893 = vpop.xlane.xlu0 %892
        %v894 = vsub.f32 %v890, %v893
        %v895 = vmul.f32 %v894, 1.442695
        %v896 = vpow.pop %v895
        %v897 = vsel %vm726, %v896, 0.0
        %898 = vadd.xlane.f32.xlu0 %v897
        %v899 = vpop.xlane.xlu0 %898
        %v900 = vrcp.pop %v899
        %v901 = vmul.f32 %v896, %v900
        %v902 = vpack.c.bf16 %v901, %v901
        %903 = vrot.lane.b32.xlu0 %v722, 56
        %v904 = vpop.permute.xlu0 %903
        %v906 = vsel %vm726, %v902, 0
        %v909 = vsel %vm792, %v904, 0
        %911 = vmatprep.subr.bf16.mxu0 0
        %912 = vmatpush1.bf16.msra.mxu0 0
        %913 = vmatprep.subr.bf16.mxu0 0
        %914 = vmatpush1.bf16.msra.mxu0 0
        %915 = vmatprep.subr.bf16.mxu0 0
        %916 = vmatpush1.bf16.msra.mxu0 0
        %917 = vmatprep.subr.bf16.mxu0 0
        %918 = vmatpush1.bf16.msra.mxu0 0
        %919 = vmatprep.subr.bf16.mxu0 0
        %920 = vmatpush1.bf16.msra.mxu0 0
        %921 = vmatprep.subr.bf16.mxu0 0
        %922 = vmatpush1.bf16.msra.mxu0 0
        %923 = vmatprep.subr.bf16.mxu0 0
        %924 = vmatpush1.bf16.msra.mxu0 0
        %925 = vmatprep.subr.bf16.mxu0 0
        %926 = vmatpush1.bf16.msra.mxu0 %v909
        %927 = vmatprep.subr.bf16.mxu0 0
        %928 = vmatpush2.bf16.msra.mxu0 0
        %929 = vmatprep.subr.bf16.mxu0 0
        %930 = vmatpush2.bf16.msra.mxu0 0
        %931 = vmatprep.subr.bf16.mxu0 0
        %932 = vmatpush2.bf16.msra.mxu0 0
        %933 = vmatprep.subr.bf16.mxu0 0
        %934 = vmatpush2.bf16.msra.mxu0 0
        %935 = vmatprep.subr.bf16.mxu0 0
        %936 = vmatpush2.bf16.msra.mxu0 0
        %937 = vmatprep.subr.bf16.mxu0 0
        %938 = vmatpush2.bf16.msra.mxu0 0
        %939 = vmatprep.subr.bf16.mxu0 0
        %940 = vmatpush2.bf16.msra.mxu0 0
        %941 = vmatprep.subr.bf16.mxu0 0
        %942 = vmatpush2.bf16.msra.mxu0 0
        %943 = vmatprep.mubr.bf16.mxu0 0
        %944 = vmatmul.mubr.bf16.gmra.mxu0 %v906
        %v945 = vpop.f32.mrf.mxu0
        %v946 = vadd.f32 0.0, %v945
        %v947 = vpop.f32.mrf.mxu0
        %v948 = vpop.f32.mrf.mxu0
        %v949 = vpop.f32.mrf.mxu0
        %950 = vdwg.mxu0
        %v951 = vpack.c.bf16 %v946, %v946
        %v953 = vunpack.c.l.b16 %v951
        %v954 = vpack.c.b16 %v953, %v953
        %955 = vrot.lane.b32.xlu0 %v954, 8
        %v956 = vpop.permute.xlu0 %955
        %vm958 = vcmask 126016
        %959 = vst.msk [vmem:[#allocation2] sm:$0xf] %vm958, %v956
        %960 = vrot.lane.b32.xlu0 %v722, 112
        %v961 = vpop.permute.xlu0 %960
        %962 = vrot.lane.b32.xlu0 %v722, 80
        %v963 = vpop.permute.xlu0 %962
        %v965 = vsel %vm726, %v961, 0
        %v968 = vsel %vm726, %v963, 0
        %970 = vmatprep.subr.bf16.mxu0 0
        %971 = vmatpush1.bf16.xpose.msra.mxu0 0
        %972 = vmatprep.subr.bf16.mxu0 0
        %973 = vmatpush1.bf16.xpose.msra.mxu0 0
        %974 = vmatprep.subr.bf16.mxu0 0
        %975 = vmatpush1.bf16.xpose.msra.mxu0 0
        %976 = vmatprep.subr.bf16.mxu0 0
        %977 = vmatpush1.bf16.xpose.msra.mxu0 0
        %978 = vmatprep.subr.bf16.mxu0 0
        %979 = vmatpush1.bf16.xpose.msra.mxu0 0
        %980 = vmatprep.subr.bf16.mxu0 0
        %981 = vmatpush1.bf16.xpose.msra.mxu0 0
        %982 = vmatprep.subr.bf16.mxu0 0
        %983 = vmatpush1.bf16.xpose.msra.mxu0 0
        %984 = vmatprep.subr.bf16.mxu0 0
        %985 = vmatpush1.bf16.xpose.msra.mxu0 %v968
        %986 = vmatprep.subr.bf16.mxu0 0
        %987 = vmatpush2.bf16.xpose.msra.mxu0 0
        %988 = vmatprep.subr.bf16.mxu0 0
        %989 = vmatpush2.bf16.xpose.msra.mxu0 0
        %990 = vmatprep.subr.bf16.mxu0 0
        %991 = vmatpush2.bf16.xpose.msra.mxu0 0
        %992 = vmatprep.subr.bf16.mxu0 0
        %993 = vmatpush2.bf16.xpose.msra.mxu0 0
        %994 = vmatprep.subr.bf16.mxu0 0
        %995 = vmatpush2.bf16.xpose.msra.mxu0 0
        %996 = vmatprep.subr.bf16.mxu0 0
        %997 = vmatpush2.bf16.xpose.msra.mxu0 0
        %998 = vmatprep.subr.bf16.mxu0 0
        %999 = vmatpush2.bf16.xpose.msra.mxu0 0
        %1000 = vmatprep.subr.bf16.mxu0 0
        %1001 = vmatpush2.bf16.xpose.msra.mxu0 0
        %1002 = vmatprep.mubr.bf16.mxu0 0
        %1003 = vmatmul.mubr.bf16.gmra.mxu0 %v965
        %v1004 = vpop.f32.mrf.mxu0
        %v1005 = vadd.f32 0.0, %v1004
        %v1006 = vpop.f32.mrf.mxu0
        %v1007 = vpop.f32.mrf.mxu0
        %v1008 = vpop.f32.mrf.mxu0
        %1009 = vdwg.mxu0
        %v1010 = vmul.f32 %v1005, 0.35355338
        %v1011 = vsel %vm721, %v1010, -1e+30
        %v1012 = vsel %vm726, %v1011, -inf
        %1013 = vmax.xlane.f32.xlu0 %v1012
        %v1014 = vpop.xlane.xlu0 %1013
        %v1015 = vsub.f32 %v1011, %v1014
        %v1016 = vmul.f32 %v1015, 1.442695
        %v1017 = vpow.pop %v1016
        %v1018 = vsel %vm726, %v1017, 0.0
        %1019 = vadd.xlane.f32.xlu0 %v1018
        %v1020 = vpop.xlane.xlu0 %1019
        %v1021 = vrcp.pop %v1020
        %v1022 = vmul.f32 %v1017, %v1021
        %v1023 = vpack.c.bf16 %v1022, %v1022
        %1024 = vrot.lane.b32.xlu0 %v722, 48
        %v1025 = vpop.permute.xlu0 %1024
        %v1027 = vsel %vm726, %v1023, 0
        %v1030 = vsel %vm792, %v1025, 0
        %1032 = vmatprep.subr.bf16.mxu0 0
        %1033 = vmatpush1.bf16.msra.mxu0 0
        %1034 = vmatprep.subr.bf16.mxu0 0
        %1035 = vmatpush1.bf16.msra.mxu0 0
        %1036 = vmatprep.subr.bf16.mxu0 0
        %1037 = vmatpush1.bf16.msra.mxu0 0
        %1038 = vmatprep.subr.bf16.mxu0 0
        %1039 = vmatpush1.bf16.msra.mxu0 0
        %1040 = vmatprep.subr.bf16.mxu0 0
        %1041 = vmatpush1.bf16.msra.mxu0 0
        %1042 = vmatprep.subr.bf16.mxu0 0
        %1043 = vmatpush1.bf16.msra.mxu0 0
        %1044 = vmatprep.subr.bf16.mxu0 0
        %1045 = vmatpush1.bf16.msra.mxu0 0
        %1046 = vmatprep.subr.bf16.mxu0 0
        %1047 = vmatpush1.bf16.msra.mxu0 %v1030
        %1048 = vmatprep.subr.bf16.mxu0 0
        %1049 = vmatpush2.bf16.msra.mxu0 0
        %1050 = vmatprep.subr.bf16.mxu0 0
        %1051 = vmatpush2.bf16.msra.mxu0 0
        %1052 = vmatprep.subr.bf16.mxu0 0
        %1053 = vmatpush2.bf16.msra.mxu0 0
        %1054 = vmatprep.subr.bf16.mxu0 0
        %1055 = vmatpush2.bf16.msra.mxu0 0
        %1056 = vmatprep.subr.bf16.mxu0 0
        %1057 = vmatpush2.bf16.msra.mxu0 0
        %1058 = vmatprep.subr.bf16.mxu0 0
        %1059 = vmatpush2.bf16.msra.mxu0 0
        %1060 = vmatprep.subr.bf16.mxu0 0
        %1061 = vmatpush2.bf16.msra.mxu0 0
        %1062 = vmatprep.subr.bf16.mxu0 0
        %1063 = vmatpush2.bf16.msra.mxu0 0
        %1064 = vmatprep.mubr.bf16.mxu0 0
        %1065 = vmatmul.mubr.bf16.gmra.mxu0 %v1027
        %v1066 = vpop.f32.mrf.mxu0
        %v1067 = vadd.f32 0.0, %v1066
        %v1068 = vpop.f32.mrf.mxu0
        %v1069 = vpop.f32.mrf.mxu0
        %v1070 = vpop.f32.mrf.mxu0
        %1071 = vdwg.mxu0
        %v1072 = vpack.c.bf16 %v1067, %v1067
        %v1074 = vunpack.c.l.b16 %v1072
        %v1075 = vpack.c.b16 %v1074, %v1074
        %1076 = vrot.lane.b32.xlu0 %v1075, 16
        %v1077 = vpop.permute.xlu0 %1076
        %vm1079 = vcmask 191616
        %1080 = vst.msk [vmem:[#allocation2] sm:$0xf] %vm1079, %v1077
        %1081 = vrot.lane.b32.xlu0 %v722, 104
        %v1082 = vpop.permute.xlu0 %1081
        %1083 = vrot.lane.b32.xlu0 %v722, 72
        %v1084 = vpop.permute.xlu0 %1083
        %v1086 = vsel %vm726, %v1082, 0
        %v1089 = vsel %vm726, %v1084, 0
        %1091 = vmatprep.subr.bf16.mxu0 0
        %1092 = vmatpush1.bf16.xpose.msra.mxu0 0
        %1093 = vmatprep.subr.bf16.mxu0 0
        %1094 = vmatpush1.bf16.xpose.msra.mxu0 0
        %1095 = vmatprep.subr.bf16.mxu0 0
        %1096 = vmatpush1.bf16.xpose.msra.mxu0 0
        %1097 = vmatprep.subr.bf16.mxu0 0
        %1098 = vmatpush1.bf16.xpose.msra.mxu0 0
        %1099 = vmatprep.subr.bf16.mxu0 0
        %1100 = vmatpush1.bf16.xpose.msra.mxu0 0
        %1101 = vmatprep.subr.bf16.mxu0 0
        %1102 = vmatpush1.bf16.xpose.msra.mxu0 0
        %1103 = vmatprep.subr.bf16.mxu0 0
        %1104 = vmatpush1.bf16.xpose.msra.mxu0 0
        %1105 = vmatprep.subr.bf16.mxu0 0
        %1106 = vmatpush1.bf16.xpose.msra.mxu0 %v1089
        %1107 = vmatprep.subr.bf16.mxu0 0
        %1108 = vmatpush2.bf16.xpose.msra.mxu0 0
        %1109 = vmatprep.subr.bf16.mxu0 0
        %1110 = vmatpush2.bf16.xpose.msra.mxu0 0
        %1111 = vmatprep.subr.bf16.mxu0 0
        %1112 = vmatpush2.bf16.xpose.msra.mxu0 0
        %1113 = vmatprep.subr.bf16.mxu0 0
        %1114 = vmatpush2.bf16.xpose.msra.mxu0 0
        %1115 = vmatprep.subr.bf16.mxu0 0
        %1116 = vmatpush2.bf16.xpose.msra.mxu0 0
        %1117 = vmatprep.subr.bf16.mxu0 0
        %1118 = vmatpush2.bf16.xpose.msra.mxu0 0
        %1119 = vmatprep.subr.bf16.mxu0 0
        %1120 = vmatpush2.bf16.xpose.msra.mxu0 0
        %1121 = vmatprep.subr.bf16.mxu0 0
        %1122 = vmatpush2.bf16.xpose.msra.mxu0 0
        %1123 = vmatprep.mubr.bf16.mxu0 0
        %1124 = vmatmul.mubr.bf16.gmra.mxu0 %v1086
        %v1125 = vpop.f32.mrf.mxu0
        %v1126 = vadd.f32 0.0, %v1125
        %v1127 = vpop.f32.mrf.mxu0
        %v1128 = vpop.f32.mrf.mxu0
        %v1129 = vpop.f32.mrf.mxu0
        %1130 = vdwg.mxu0
        %v1131 = vmul.f32 %v1126, 0.35355338
        %v1132 = vsel %vm721, %v1131, -1e+30
        %v1133 = vsel %vm726, %v1132, -inf
        %1134 = vmax.xlane.f32.xlu0 %v1133
        %v1135 = vpop.xlane.xlu0 %1134
        %v1136 = vsub.f32 %v1132, %v1135
        %v1137 = vmul.f32 %v1136, 1.442695
        %v1138 = vpow.pop %v1137
        %v1139 = vsel %vm726, %v1138, 0.0
        %1140 = vadd.xlane.f32.xlu0 %v1139
        %v1141 = vpop.xlane.xlu0 %1140
        %v1142 = vrcp.pop %v1141
        %v1143 = vmul.f32 %v1138, %v1142
        %v1144 = vpack.c.bf16 %v1143, %v1143
        %1145 = vrot.lane.b32.xlu0 %v722, 40
        %v1146 = vpop.permute.xlu0 %1145
        %v1148 = vsel %vm726, %v1144, 0
        %v1151 = vsel %vm792, %v1146, 0
        %1153 = vmatprep.subr.bf16.mxu0 0
        %1154 = vmatpush1.bf16.msra.mxu0 0
        %1155 = vmatprep.subr.bf16.mxu0 0
        %1156 = vmatpush1.bf16.msra.mxu0 0
        %1157 = vmatprep.subr.bf16.mxu0 0
        %1158 = vmatpush1.bf16.msra.mxu0 0
        %1159 = vmatprep.subr.bf16.mxu0 0
        %1160 = vmatpush1.bf16.msra.mxu0 0
        %1161 = vmatprep.subr.bf16.mxu0 0
        %1162 = vmatpush1.bf16.msra.mxu0 0
        %1163 = vmatprep.subr.bf16.mxu0 0
        %1164 = vmatpush1.bf16.msra.mxu0 0
        %1165 = vmatprep.subr.bf16.mxu0 0
        %1166 = vmatpush1.bf16.msra.mxu0 0
        %1167 = vmatprep.subr.bf16.mxu0 0
        %1168 = vmatpush1.bf16.msra.mxu0 %v1151
        %1169 = vmatprep.subr.bf16.mxu0 0
        %1170 = vmatpush2.bf16.msra.mxu0 0
        %1171 = vmatprep.subr.bf16.mxu0 0
        %1172 = vmatpush2.bf16.msra.mxu0 0
        %1173 = vmatprep.subr.bf16.mxu0 0
        %1174 = vmatpush2.bf16.msra.mxu0 0
        %1175 = vmatprep.subr.bf16.mxu0 0
        %1176 = vmatpush2.bf16.msra.mxu0 0
        %1177 = vmatprep.subr.bf16.mxu0 0
        %1178 = vmatpush2.bf16.msra.mxu0 0
        %1179 = vmatprep.subr.bf16.mxu0 0
        %1180 = vmatpush2.bf16.msra.mxu0 0
        %1181 = vmatprep.subr.bf16.mxu0 0
        %1182 = vmatpush2.bf16.msra.mxu0 0
        %1183 = vmatprep.subr.bf16.mxu0 0
        %1184 = vmatpush2.bf16.msra.mxu0 0
        %1185 = vmatprep.mubr.bf16.mxu0 0
        %1186 = vmatmul.mubr.bf16.gmra.mxu0 %v1148
        %v1187 = vpop.f32.mrf.mxu0
        %v1188 = vadd.f32 0.0, %v1187
        %v1189 = vpop.f32.mrf.mxu0
        %v1190 = vpop.f32.mrf.mxu0
        %v1191 = vpop.f32.mrf.mxu0
        %1192 = vdwg.mxu0
        %v1193 = vpack.c.bf16 %v1188, %v1188
        %v1195 = vunpack.c.l.b16 %v1193
        %v1196 = vpack.c.b16 %v1195, %v1195
        %1197 = vrot.lane.b32.xlu0 %v1196, 24
        %v1198 = vpop.permute.xlu0 %1197
        %vm1200 = vcmask 257216
        %1201 = vst.msk [vmem:[#allocation2] sm:$0xf] %vm1200, %v1198
        %v1202 = vld [vmem:[#allocation2] sm:$0xf]
        %v1203 = vld [vmem:[%s608] sm:$0xf]
        %v1204 = vld [vmem:[%s608 + $0x4] sm:$0xf]
        %v1205 = vld [vmem:[%s608 + $0x8] sm:$0xf]
        %v1206 = vld [vmem:[%s608 + $0xc] sm:$0xf]
        %v1207 = vld [vmem:[%s611] sm:$0x1]
        %v1209 = vlaneseq
        %v1210 = vshrl.u32 %v1209, 7
        %v1211 = vsub.s32 0, %v1210
        %v1212 = vrot.slane %v1207, %v1211
        %v1218 = vunpack.c.l.b16 %v1203
        %v1219 = vunpack.c.l.b16 %v1204
        %v1220 = vunpack.c.l.b16 %v1205
        %v1221 = vunpack.c.l.b16 %v1206
        %v1222 = vpack.c.b16 %v1219, %v1218
        %v1223 = vpack.c.b16 %v1221, %v1220
        %v1227 = vsel %vm673, %v1202, 0
        %1229 = vmatprep.subr.bf16.mxu0 0
        %1230 = vmatpush1.bf16.msra.mxu0 0
        %1231 = vmatprep.subr.bf16.mxu0 0
        %1232 = vmatpush1.bf16.msra.mxu0 0
        %1233 = vmatprep.subr.bf16.mxu0 0
        %1234 = vmatpush1.bf16.msra.mxu0 0
        %1235 = vmatprep.subr.bf16.mxu0 0
        %1236 = vmatpush1.bf16.msra.mxu0 0
        %1237 = vmatprep.subr.bf16.mxu0 0
        %1238 = vmatpush1.bf16.msra.mxu0 0
        %1239 = vmatprep.subr.bf16.mxu0 0
        %1240 = vmatpush1.bf16.msra.mxu0 0
        %1241 = vmatprep.subr.bf16.mxu0 0
        %1242 = vmatpush1.bf16.msra.mxu0 %v1223
        %1243 = vmatprep.subr.bf16.mxu0 0
        %1244 = vmatpush1.bf16.msra.mxu0 %v1222
        %1245 = vmatprep.subr.bf16.mxu0 0
        %1246 = vmatpush2.bf16.msra.mxu0 0
        %1247 = vmatprep.subr.bf16.mxu0 0
        %1248 = vmatpush2.bf16.msra.mxu0 0
        %1249 = vmatprep.subr.bf16.mxu0 0
        %1250 = vmatpush2.bf16.msra.mxu0 0
        %1251 = vmatprep.subr.bf16.mxu0 0
        %1252 = vmatpush2.bf16.msra.mxu0 0
        %1253 = vmatprep.subr.bf16.mxu0 0
        %1254 = vmatpush2.bf16.msra.mxu0 0
        %1255 = vmatprep.subr.bf16.mxu0 0
        %1256 = vmatpush2.bf16.msra.mxu0 0
        %1257 = vmatprep.subr.bf16.mxu0 0
        %1258 = vmatpush2.bf16.msra.mxu0 0
        %1259 = vmatprep.subr.bf16.mxu0 0
        %1260 = vmatpush2.bf16.msra.mxu0 0
        %1261 = vmatprep.mubr.bf16.mxu0 0
        %1262 = vmatmul.mubr.bf16.gmra.mxu0 %v1227
        %v1263 = vpop.f32.mrf.mxu0
        %v1264 = vadd.f32 %v1212, %v1263
        %v1265 = vpop.f32.mrf.mxu0
        %v1266 = vpop.f32.mrf.mxu0
        %v1267 = vpop.f32.mrf.mxu0
        %1268 = vdwg.mxu0
        %v1269 = vadd.f32 %v649, %v1264
        %v1270 = vsel %vm673, %v1269, 0.0
        %1271 = vadd.xlane.f32.xlu0 %v1270
        %v1272 = vpop.xlane.xlu0 %1271
        %v1273 = vrcp.pop 32.0
        %v1274 = vmul.f32 %v1272, %v1273
        %v1275 = vsub.f32 %v1269, %v1274
        %v1276 = vmul.f32 %v1275, %v1275
        %v1277 = vsel %vm673, %v1276, 0.0
        %1278 = vadd.xlane.f32.xlu0 %v1277
        %v1279 = vpop.xlane.xlu0 %1278
        %v1280 = vmul.f32 %v1279, %v1273
        %v1281 = vadd.f32 %v1280, 1e-05
        %v1282 = vrsqrt.pop %v1281
        %v1283 = vmul.f32 %v1275, %v1282
        %v1284 = vld [vmem:[%s614] sm:$0x1]
        %v1286 = vlaneseq
        %v1287 = vshrl.u32 %v1286, 7
        %v1288 = vsub.s32 0, %v1287
        %v1289 = vrot.slane %v1284, %v1288
        %v1291 = vmul.f32 %v1283, %v1289
        %v1292 = vld [vmem:[%s617] sm:$0x1]
        %v1294 = vlaneseq
        %v1295 = vshrl.u32 %v1294, 7
        %v1296 = vsub.s32 0, %v1295
        %v1297 = vrot.slane %v1292, %v1296
        %v1299 = vadd.f32 %v1291, %v1297
        %v1300 = vpack.c.bf16 %v1299, %v1299
        %v1301 = vld [vmem:[%s622] sm:$0xf]
        %v1302 = vld [vmem:[%s622 + $0x4] sm:$0xf]
        %v1303 = vld [vmem:[%s622 + $0x8] sm:$0xf]
        %v1304 = vld [vmem:[%s622 + $0xc] sm:$0xf]
        %v1305 = vld [vmem:[%s625] sm:$0x1]
        %v1307 = vlaneseq
        %v1308 = vshrl.u32 %v1307, 7
        %v1309 = vsub.s32 0, %v1308
        %v1310 = vrot.slane %v1305, %v1309
        %v1316 = vunpack.c.l.b16 %v1301
        %v1317 = vunpack.c.l.b16 %v1302
        %v1318 = vunpack.c.l.b16 %v1303
        %v1319 = vunpack.c.l.b16 %v1304
        %v1320 = vpack.c.b16 %v1317, %v1316
        %v1321 = vpack.c.b16 %v1319, %v1318
        %v1325 = vsel %vm673, %v1300, 0
        %1327 = vmatprep.subr.bf16.mxu0 0
        %1328 = vmatpush1.bf16.msra.mxu0 0
        %1329 = vmatprep.subr.bf16.mxu0 0
        %1330 = vmatpush1.bf16.msra.mxu0 0
        %1331 = vmatprep.subr.bf16.mxu0 0
        %1332 = vmatpush1.bf16.msra.mxu0 0
        %1333 = vmatprep.subr.bf16.mxu0 0
        %1334 = vmatpush1.bf16.msra.mxu0 0
        %1335 = vmatprep.subr.bf16.mxu0 0
        %1336 = vmatpush1.bf16.msra.mxu0 0
        %1337 = vmatprep.subr.bf16.mxu0 0
        %1338 = vmatpush1.bf16.msra.mxu0 0
        %1339 = vmatprep.subr.bf16.mxu0 0
        %1340 = vmatpush1.bf16.msra.mxu0 %v1321
        %1341 = vmatprep.subr.bf16.mxu0 0
        %1342 = vmatpush1.bf16.msra.mxu0 %v1320
        %1343 = vmatprep.subr.bf16.mxu0 0
        %1344 = vmatpush2.bf16.msra.mxu0 0
        %1345 = vmatprep.subr.bf16.mxu0 0
        %1346 = vmatpush2.bf16.msra.mxu0 0
        %1347 = vmatprep.subr.bf16.mxu0 0
        %1348 = vmatpush2.bf16.msra.mxu0 0
        %1349 = vmatprep.subr.bf16.mxu0 0
        %1350 = vmatpush2.bf16.msra.mxu0 0
        %1351 = vmatprep.subr.bf16.mxu0 0
        %1352 = vmatpush2.bf16.msra.mxu0 0
        %1353 = vmatprep.subr.bf16.mxu0 0
        %1354 = vmatpush2.bf16.msra.mxu0 0
        %1355 = vmatprep.subr.bf16.mxu0 0
        %1356 = vmatpush2.bf16.msra.mxu0 0
        %1357 = vmatprep.subr.bf16.mxu0 0
        %1358 = vmatpush2.bf16.msra.mxu0 0
        %1359 = vmatprep.mubr.bf16.mxu0 0
        %1360 = vmatmul.mubr.bf16.gmra.mxu0 %v1325
        %v1361 = vpop.f32.mrf.mxu0
        %v1362 = vadd.f32 %v1310, %v1361
        %v1363 = vpop.f32.mrf.mxu0
        %v1364 = vpop.f32.mrf.mxu0
        %v1365 = vpop.f32.mrf.mxu0
        %1366 = vdwg.mxu0
        %v1367 = vmul.f32 %v1362, %v1362
        %v1368 = vmul.f32 %v1362, %v1367
        %v1369 = vmul.f32 %v1368, 0.044715
        %v1370 = vadd.f32 %v1362, %v1369
        %v1371 = vmul.f32 %v1370, 0.7978846
        %v1372 = vtanh.pop %v1371
        %v1373 = vadd.f32 %v1372, 1.0
        %v1374 = vmul.f32 %v1373, 0.5
        %v1375 = vmul.f32 %v1362, %v1374
        %v1376 = vpack.c.bf16 %v1375, %v1375
        %v1377 = vld [vmem:[%s630] sm:$0xf]
        %v1378 = vld [vmem:[%s630 + $0x4] sm:$0xf]
        %v1379 = vld [vmem:[%s630 + $0x8] sm:$0xf]
        %v1380 = vld [vmem:[%s630 + $0xc] sm:$0xf]
        %v1381 = vld [vmem:[%s630 + $0x10] sm:$0xf]
        %v1382 = vld [vmem:[%s630 + $0x14] sm:$0xf]
        %v1383 = vld [vmem:[%s630 + $0x18] sm:$0xf]
        %v1384 = vld [vmem:[%s630 + $0x1c] sm:$0xf]
        %v1385 = vld [vmem:[%s630 + $0x20] sm:$0xf]
        %v1386 = vld [vmem:[%s630 + $0x24] sm:$0xf]
        %v1387 = vld [vmem:[%s630 + $0x28] sm:$0xf]
        %v1388 = vld [vmem:[%s630 + $0x2c] sm:$0xf]
        %v1389 = vld [vmem:[%s630 + $0x30] sm:$0xf]
        %v1390 = vld [vmem:[%s630 + $0x34] sm:$0xf]
        %v1391 = vld [vmem:[%s630 + $0x38] sm:$0xf]
        %v1392 = vld [vmem:[%s630 + $0x3c] sm:$0xf]
        %v1393 = vld [vmem:[%s633] sm:$0x1]
        %v1395 = vlaneseq
        %v1396 = vshrl.u32 %v1395, 7
        %v1397 = vsub.s32 0, %v1396
        %v1398 = vrot.slane %v1393, %v1397
        %v1416 = vunpack.c.l.b16 %v1377
        %v1417 = vunpack.c.l.b16 %v1378
        %v1418 = vunpack.c.l.b16 %v1379
        %v1419 = vunpack.c.l.b16 %v1380
        %v1420 = vunpack.c.l.b16 %v1381
        %v1421 = vunpack.c.l.b16 %v1382
        %v1422 = vunpack.c.l.b16 %v1383
        %v1423 = vunpack.c.l.b16 %v1384
        %v1424 = vunpack.c.l.b16 %v1385
        %v1425 = vunpack.c.l.b16 %v1386
        %v1426 = vunpack.c.l.b16 %v1387
        %v1427 = vunpack.c.l.b16 %v1388
        %v1428 = vunpack.c.l.b16 %v1389
        %v1429 = vunpack.c.l.b16 %v1390
        %v1430 = vunpack.c.l.b16 %v1391
        %v1431 = vunpack.c.l.b16 %v1392
        %v1432 = vpack.c.b16 %v1417, %v1416
        %v1433 = vpack.c.b16 %v1419, %v1418
        %v1434 = vpack.c.b16 %v1421, %v1420
        %v1435 = vpack.c.b16 %v1423, %v1422
        %v1436 = vpack.c.b16 %v1425, %v1424
        %v1437 = vpack.c.b16 %v1427, %v1426
        %v1438 = vpack.c.b16 %v1429, %v1428
        %v1439 = vpack.c.b16 %v1431, %v1430
        %1448 = vmatprep.subr.bf16.mxu0 0
        %1449 = vmatpush1.bf16.msra.mxu0 %v1439
        %1450 = vmatprep.subr.bf16.mxu0 0
        %1451 = vmatpush1.bf16.msra.mxu0 %v1438
        %1452 = vmatprep.subr.bf16.mxu0 0
        %1453 = vmatpush1.bf16.msra.mxu0 %v1437
        %1454 = vmatprep.subr.bf16.mxu0 0
        %1455 = vmatpush1.bf16.msra.mxu0 %v1436
        %1456 = vmatprep.subr.bf16.mxu0 0
        %1457 = vmatpush1.bf16.msra.mxu0 %v1435
        %1458 = vmatprep.subr.bf16.mxu0 0
        %1459 = vmatpush1.bf16.msra.mxu0 %v1434
        %1460 = vmatprep.subr.bf16.mxu0 0
        %1461 = vmatpush1.bf16.msra.mxu0 %v1433
        %1462 = vmatprep.subr.bf16.mxu0 0
        %1463 = vmatpush1.bf16.msra.mxu0 %v1432
        %1464 = vmatprep.subr.bf16.mxu0 0
        %1465 = vmatpush2.bf16.msra.mxu0 0
        %1466 = vmatprep.subr.bf16.mxu0 0
        %1467 = vmatpush2.bf16.msra.mxu0 0
        %1468 = vmatprep.subr.bf16.mxu0 0
        %1469 = vmatpush2.bf16.msra.mxu0 0
        %1470 = vmatprep.subr.bf16.mxu0 0
        %1471 = vmatpush2.bf16.msra.mxu0 0
        %1472 = vmatprep.subr.bf16.mxu0 0
        %1473 = vmatpush2.bf16.msra.mxu0 0
        %1474 = vmatprep.subr.bf16.mxu0 0
        %1475 = vmatpush2.bf16.msra.mxu0 0
        %1476 = vmatprep.subr.bf16.mxu0 0
        %1477 = vmatpush2.bf16.msra.mxu0 0
        %1478 = vmatprep.subr.bf16.mxu0 0
        %1479 = vmatpush2.bf16.msra.mxu0 0
        %1480 = vmatprep.mubr.bf16.mxu0 0
        %1481 = vmatmul.mubr.bf16.gmra.mxu0 %v1376
        %v1482 = vpop.f32.mrf.mxu0
        %v1483 = vadd.f32 %v1398, %v1482
        %v1484 = vpop.f32.mrf.mxu0
        %v1485 = vpop.f32.mrf.mxu0
        %v1486 = vpop.f32.mrf.mxu0
        %1487 = vdwg.mxu0
        %v1488 = vadd.f32 %v1299, %v1483
        %v1489 = vsel %vm673, %v1488, 0.0
        %1490 = vadd.xlane.f32.xlu0 %v1489
        %v1491 = vpop.xlane.xlu0 %1490
        %v1492 = vmul.f32 %v1491, %v1273
        %v1493 = vsub.f32 %v1488, %v1492
        %v1494 = vmul.f32 %v1493, %v1493
        %v1495 = vsel %vm673, %v1494, 0.0
        %1496 = vadd.xlane.f32.xlu0 %v1495
        %v1497 = vpop.xlane.xlu0 %1496
        %v1498 = vmul.f32 %v1497, %v1273
        %v1499 = vadd.f32 %v1498, 1e-05
        %v1500 = vrsqrt.pop %v1499
        %v1501 = vmul.f32 %v1493, %v1500
        %v1502 = vld [vmem:[%s636] sm:$0x1]
        %v1504 = vlaneseq
        %v1505 = vshrl.u32 %v1504, 7
        %v1506 = vsub.s32 0, %v1505
        %v1507 = vrot.slane %v1502, %v1506
        %v1509 = vmul.f32 %v1501, %v1507
        %v1510 = vld [vmem:[%s639] sm:$0x1]
        %v1512 = vlaneseq
        %v1513 = vshrl.u32 %v1512, 7
        %v1514 = vsub.s32 0, %v1513
        %v1515 = vrot.slane %v1510, %v1514
        %v1517 = vadd.f32 %v1509, %v1515
        %v1518 = vpack.c.bf16 %v1517, %v1517
        %vm1519 = vcmask 257024
        %1520 = vst.msk [vmem:[%s591] sm:$0xf] %vm1519, %v1518
        %s1521 = sand.u32 %s385, 1
        %s1522 = scalar_lea.sflag [#allocation4], %s1521
        %s1523 = sand.u32 %s385, 1
        %s1524 = smul.addr %s1523, 4
        %s1525 = scalar_lea.vmem [#allocation3], %s1524
        // Predicated region
        $region77: #{tpu_custom_call.1} parent=71 // pred_check
          %p1526 = pneg %p395
        $region78: #{tpu_custom_call.1} parent=71 // pred_check_branch
          %1528 = sbr.rel (%p1526) target = $region80
        $region79: #{tpu_custom_call.1} parent=71 // pred_region
          %s1530 = ssub.s32 64, 64
          %1531 = vsyncadd %s1522, %s1530
          %s1532 = smul.addr %s31, 64
          %s1533 = scalar_lea.hbm %s13, %s1532
          %s1535 = sshll.u32 %s1525, 4
          %s1536 = int_to_ptr.vmem [resolvable:$true] %s1535
          %1538 = dma.vmem_to_hbm [thread:$0]  %s1536, 64, %s1533, %s1522
        $region80: #{tpu_custom_call.1} parent=71 // pred_fallthru
          _
      $region72: #{tpu_custom_call.1} parent=5 // pred_fallthru
        _
      %p1539 = scmp.le.s32.totalorder 2, %s22
      // Predicated region
      $region81: #{tpu_custom_call.1} parent=5 // pred_check
        %p1540 = pneg %p1539
      $region82: #{tpu_custom_call.1} parent=5 // pred_check_branch
        %1542 = sbr.rel (%p1540) target = $region84
      $region83: #{tpu_custom_call.1} parent=5 // pred_region
        %s1543 = ssub.s32 %s22, 2
        // Predicated region
        $region85: #{tpu_custom_call.1} parent=83 // pred_check
          %p1544 = pneg %p401
        $region86: #{tpu_custom_call.1} parent=83 // pred_check_branch
          %1546 = sbr.rel (%p1544) target = $region88
        $region87: #{tpu_custom_call.1} parent=83 // pred_region
          %s1547 = sand.u32 %s386, 1
          %s1548 = scalar_lea.sflag [#allocation4], %s1547
          %s1549 = sand.u32 %s386, 1
          %s1550 = smul.addr %s1549, 4
          %s1551 = scalar_lea.vmem [#allocation3], %s1550
          %1552 = dma.done %s1548, 64
        $region88: #{tpu_custom_call.1} parent=83 // pred_fallthru
          _
      $region84: #{tpu_custom_call.1} parent=5 // pred_fallthru
        _
    $region6: #{tpu_custom_call.1} parent=1 // loop_footer
      %s26 = sadd.s32 1, %s22
    $region7: #{tpu_custom_call.1} parent=1 // loop_footer_branch
      %21 = sbr.rel target = $region3
    $region8: #{tpu_custom_call.1} parent=1 // loop_exit
      _
    %1553 = vsyncpa [#allocation4], 1
    %s1554 = scalar_lea.sflag [#allocation4], 1
    %1555 = vsyncpa %s1554, 1

</llo_original>
